<compile_context>
chip_gen: v5e
topology: v5e:2x2
jax: 0.10.0
libtpu: 0.0.40
codegen_flags: <defaults>
</compile_context>

<pallas_src>
import functools

import jax
import jax.numpy as jnp
import numpy as np
from jax import lax
from jax.experimental import pallas as pl
from jax.experimental.pallas import tpu as pltpu


def _intention_core(alpha, kvT, qT, wfc, bfc_row, o_ref, *, num_head,
                    head_dim, mask):
    """Shared per-grid-step math.

    kvT : (2E, S)  rows interleaved per head as [K_h^T ; V_h^T]   (f32)
    qT  : (E, Sq)  transposed Q projection                        (f32)
    """
    f32 = jnp.float32
    nh, hd = num_head, head_dim

    # ---- per-head split = leading-dim reshape (free, no lane slicing) ----
    kvT3 = kvT.reshape(nh, 2 * hd, -1)        # (NH, 2hd, S) = [K^T ; V^T]
    kT3 = kvT3[:, :hd, :]                     # (NH, hd, S)
    qT3 = qT.reshape(nh, hd, -1)              # (NH, hd, Sq)

    # ---- fused [K^T K ; V^T K] for all heads in one batched MXU call ----
    aug = lax.dot_general(kvT3, kT3, (((2,), (2,)), ((0,), (0,))),
                          preferred_element_type=f32)             # (NH, 2hd, hd)
    # ridge term alpha*I only on the top (K^T K) block
    aug = aug + alpha * jnp.eye(2 * hd, hd, dtype=f32)

    # ---- batched Gauss-Jordan column sweep (no explicit inverse):
    #      afterwards the bottom block is (V^T K)(K^T K + aI)^{-1} == attn^T.
    #      (K^T K + aI) is SPD, so the unpivoted sweep is stable; exact
    #      division keeps the error far under the 1e-3 check.
    eye_hd = jnp.eye(hd, dtype=f32)                               # hoisted
    for j in range(hd):
        pivot = aug[:, j:j + 1, j:j + 1]                          # (NH, 1, 1)
        pivot_col = aug[:, :, j:j + 1] / pivot                    # (NH, 2hd, 1)
        # subtracting e_j folds the pivot-column restore into the update
        factors = aug[:, j:j + 1, :] - eye_hd[j:j + 1, :]         # (NH, 1, hd)
        aug = aug - pivot_col * factors
    attn_t = aug[:, hd:, :]                                       # (NH, hd, hd)

    if mask:
        # attn[r, c] masked for c > r  <=>  attn_t[c, r] masked for c > r
        ri = lax.broadcasted_iota(jnp.int32, (hd, hd), 0)         # c index
        ci = lax.broadcasted_iota(jnp.int32, (hd, hd), 1)         # r index
        attn_t = jnp.where((ri > ci)[None], -jnp.inf, attn_t)

    # softmax over attn's last dim == attn_t's -2 axis (exact division)
    attn_t = attn_t - jnp.max(attn_t, axis=-2, keepdims=True)
    ea = jnp.exp(attn_t)
    attn_t = ea / jnp.sum(ea, axis=-2, keepdims=True)

    # ---- out_h = Q_h @ attn_h for all heads (batched): attn^T @ Q^T ----
    outT = lax.dot_general(attn_t, qT3, (((2,), (1,)), ((0,), (0,))),
                           preferred_element_type=f32)            # (NH, hd, Sq)

    # head merge = leading-dim reshape; one small transpose so the FC matmul
    # and the output store are lane-dense along E.
    hcat = outT.reshape(nh * hd, -1).T                            # (Sq, E)
    y = lax.dot_general(hcat, wfc, (((1,), (1,)), ((), ())),
                        preferred_element_type=f32) + bfc_row     # (Sq, E)
    o_ref[0] = y.astype(o_ref.dtype)


def _intention_kernel_self(alpha_ref, x_ref, wkvq_ref, bkvq_ref, wfc_ref,
                           bfc_ref, o_ref, *, num_head, head_dim, mask):
    """Self-attention: one fused (3E, E) x (E, S) projection for K, V and Q."""
    f32 = jnp.float32
    e = num_head * head_dim
    x = x_ref[0]                                                  # (S, E)
    nt = (((1,), (1,)), ((), ()))   # contract last dims of both: yT = W @ x^T
    kvqT = lax.dot_general(wkvq_ref[...], x, nt,
                           preferred_element_type=f32) + bkvq_ref[...]   # (3E, S)
    _intention_core(alpha_ref[0], kvqT[:2 * e], kvqT[2 * e:],
                    wfc_ref[...], bfc_ref[...], o_ref,
                    num_head=num_head, head_dim=head_dim, mask=mask)


def _intention_kernel_cross(alpha_ref, x_ref, qin_ref, wkv_ref, bkv_ref,
                            wq_ref, bq_ref, wfc_ref, bfc_ref, o_ref, *,
                            num_head, head_dim, mask):
    """Cross-attention: fused (2E, E) K/V projection from x, Q from decoder_in."""
    f32 = jnp.float32
    x = x_ref[0]                                                  # (S, E)
    qin = qin_ref[0]                                              # (Sq, E)
    nt = (((1,), (1,)), ((), ()))
    kvT = lax.dot_general(wkv_ref[...], x, nt,
                          preferred_element_type=f32) + bkv_ref[...]     # (2E, S)
    qT = lax.dot_general(wq_ref[...], qin, nt,
                         preferred_element_type=f32) + bq_ref[...]       # (E, Sq)
    _intention_core(alpha_ref[0], kvT, qT, wfc_ref[...], bfc_ref[...], o_ref,
                    num_head=num_head, head_dim=head_dim, mask=mask)


def intention_forward(x, params, num_head, decoder_in=None, mask=False):
    b, s, e = x.shape
    assert e % num_head == 0, "embed_dim must be divisible by num_head"
    hd = e // num_head

    # --- pre-interleave K/V weights per head: rows [Wk_h ; Wv_h] per head ---
    wk, wv = params["wk"], params["wv"]
    bk, bv = params["bk"], params["bv"]
    wkv = jnp.concatenate([wk.reshape(num_head, hd, e),
                           wv.reshape(num_head, hd, e)], axis=1).reshape(2 * e, e)
    bkv = jnp.concatenate([bk.reshape(num_head, hd),
                           bv.reshape(num_head, hd)], axis=1).reshape(2 * e, 1)
    wq = params["wq"]
    bq = params["bq"].reshape(e, 1)
    wfc = params["wfc"]
    bfc_row = params["bfc"].reshape(1, e)
    alpha = params["alpha"].reshape(1).astype(jnp.float32)

    w2d = lambda i: (0, 0)   # grid-invariant 2-D weight/bias blocks

    if decoder_in is None:
        sq = s
        # fold Q into the same fused projection (self-attention path)
        wkvq = jnp.concatenate([wkv, wq], axis=0)                 # (3E, E)
        bkvq = jnp.concatenate([bkv, bq], axis=0)                 # (3E, 1)
        kernel = functools.partial(_intention_kernel_self, num_head=num_head,
                                   head_dim=hd, mask=mask)
        in_specs = [
            pl.BlockSpec(memory_space=pltpu.MemorySpace.SMEM),    # alpha
            pl.BlockSpec((1, s, e), lambda i: (i, 0, 0)),         # x
            pl.BlockSpec((3 * e, e), w2d),                        # W_kvq (fused)
            pl.BlockSpec((3 * e, 1), w2d),                        # b_kvq
            pl.BlockSpec((e, e), w2d),                            # W_fc
            pl.BlockSpec((1, e), w2d),                            # b_fc (row)
        ]
        operands = (alpha, x, wkvq, bkvq, wfc, bfc_row)
    else:
        sq = decoder_in.shape[1]
        kernel = functools.partial(_intention_kernel_cross, num_head=num_head,
                                   head_dim=hd, mask=mask)
        in_specs = [
            pl.BlockSpec(memory_space=pltpu.MemorySpace.SMEM),    # alpha
            pl.BlockSpec((1, s, e), lambda i: (i, 0, 0)),         # x
            pl.BlockSpec((1, sq, e), lambda i: (i, 0, 0)),        # decoder_in
            pl.BlockSpec((2 * e, e), w2d),                        # W_kv (fused)
            pl.BlockSpec((2 * e, 1), w2d),                        # b_kv
            pl.BlockSpec((e, e), w2d),                            # W_q
            pl.BlockSpec((e, 1), w2d),                            # b_q
            pl.BlockSpec((e, e), w2d),                            # W_fc
            pl.BlockSpec((1, e), w2d),                            # b_fc (row)
        ]
        operands = (alpha, x, decoder_in, wkv, bkv, wq, bq, wfc, bfc_row)

    grid_spec = pltpu.PrefetchScalarGridSpec(
        num_scalar_prefetch=0,
        grid=(b,),
        in_specs=in_specs,
        out_specs=pl.BlockSpec((1, sq, e), lambda i: (i, 0, 0)),   # lane-dense E
    )

    # Note: at realistic E the weight blocks dominate VMEM; the next levers
    # (per the review) are single-buffering them and, on v7x, K-tiling the
    # projections.  Unnecessary at these shapes, so kept simple.
    return pl.pallas_call(
        kernel,
        out_shape=jax.ShapeDtypeStruct((b, sq, e), x.dtype),
        grid_spec=grid_spec,
        compiler_params=pltpu.CompilerParams(
            dimension_semantics=("parallel",)),
    )(*operands)


def intention_ref(x, params, num_head, decoder_in=None, mask=False):
    """Pure-JAX reference mirroring the PyTorch forward."""
    b, s, e = x.shape
    hd = e // num_head
    qin = x if decoder_in is None else decoder_in
    with jax.default_matmul_precision("highest"):
        q = qin @ params["wq"].T + params["bq"]
        k = x @ params["wk"].T + params["bk"]
        v = x @ params["wv"].T + params["bv"]

        def split(t):
            bb, ss, _ = t.shape
            return t.reshape(bb, ss, num_head, hd).transpose(0, 2, 1, 3)

        qh, kh, vh = split(q), split(k), split(v)
        kT = jnp.swapaxes(kh, -1, -2)
        kk = kT @ kh + params["alpha"][0] * jnp.eye(hd, dtype=x.dtype)
        kk_inv = jnp.linalg.inv(kk)
        attn = kk_inv @ kT @ vh
        if mask:
            attn = attn + jnp.triu(jnp.full((hd, hd), -jnp.inf), k=1)
        attn = jax.nn.softmax(attn, axis=-1)
        out = qh @ attn                                   # (b, nh, sq, hd)
        out = out.transpose(0, 2, 1, 3).reshape(b, qin.shape[1], e)
        return out @ params["wfc"].T + params["bfc"]


if __name__ == "__main__":
    B, S, E, NH = 2, 8, 32, 4   # batch=2, seq=8, embed_dim=32, num_head=4

    key = jax.random.PRNGKey(0)
    ks = jax.random.split(key, 11)
    init = lambda k, shape: (jax.random.normal(k, shape, jnp.float32) * 0.1)
    params = {
        "wq": init(ks[0], (E, E)), "bq": init(ks[1], (E,)),
        "wk": init(ks[2], (E, E)), "bk": init(ks[3], (E,)),
        "wv": init(ks[4], (E, E)), "bv": init(ks[5], (E,)),
        "wfc": init(ks[6], (E, E)), "bfc": init(ks[7], (E,)),
        "alpha": jax.random.uniform(ks[8], (1,), jnp.float32),  # torch.rand(1)
    }
    x = jax.random.normal(ks[9], (B, S, E), jnp.float32)
    dec = jax.random.normal(ks[10], (B, S, E), jnp.float32)

    # self-attention, no mask
    out = jax.block_until_ready(intention_forward(x, params, NH))
    ref = intention_ref(x, params, NH)
    assert out.shape == (B, S, E)
    np.testing.assert_allclose(np.asarray(out), np.asarray(ref),
                               rtol=1e-3, atol=1e-3)

    # cross-attention (decoder_in) with mask
    out_m = jax.block_until_ready(
        intention_forward(x, params, NH, decoder_in=dec, mask=True))
    ref_m = intention_ref(x, params, NH, decoder_in=dec, mask=True)
    np.testing.assert_allclose(np.asarray(out_m), np.asarray(ref_m),
                               rtol=1e-3, atol=1e-3)

    print("KERNEL_OK")
</pallas_src>

<mosaic_0001>
module attributes {stable_mosaic.version = 11 : i64} {
  func.func @_intention_kernel_self(%arg0: i32, %arg1: memref<1xf32, #tpu.memory_space<smem>>, %arg2: memref<1x8x32xf32, #tpu.memory_space<vmem>>, %arg3: memref<96x32xf32, #tpu.memory_space<vmem>>, %arg4: memref<96x1xf32, #tpu.memory_space<vmem>>, %arg5: memref<32x32xf32, #tpu.memory_space<vmem>>, %arg6: memref<1x32xf32, #tpu.memory_space<vmem>>, %arg7: memref<1x8x32xf32, #tpu.memory_space<vmem>>) attributes {dimension_semantics = [#tpu.dimension_semantics<parallel>], iteration_bounds = array<i64: 2>, scalar_prefetch = 0 : i64, scratch_operands = 0 : i64, tpu.core_type = #tpu.core_type<tc>, window_params = [{transform_indices = @transform_0, window_bounds = array<i64: 1>}, {transform_indices = @transform_1, window_bounds = array<i64: 1, 8, 32>}, {pipeline_mode = #tpu.pipeline_mode<synchronous>, transform_indices = @transform_2, window_bounds = array<i64: 96, 32>}, {pipeline_mode = #tpu.pipeline_mode<synchronous>, transform_indices = @transform_3, window_bounds = array<i64: 96, 1>}, {pipeline_mode = #tpu.pipeline_mode<synchronous>, transform_indices = @transform_4, window_bounds = array<i64: 32, 32>}, {pipeline_mode = #tpu.pipeline_mode<synchronous>, transform_indices = @transform_5, window_bounds = array<i64: 1, 32>}, {transform_indices = @transform_6, window_bounds = array<i64: 1, 8, 32>}]} {
    %c0 = arith.constant 0 : index
    %c0_0 = arith.constant 0 : index
    %c0_1 = arith.constant 0 : index
    %0 = vector.load %arg2[%c0, %c0_0, %c0_1] : memref<1x8x32xf32, #tpu.memory_space<vmem>>, vector<1x8x32xf32>
    %1 = vector.shape_cast %0 : vector<1x8x32xf32> to vector<8x32xf32>
    %c0_2 = arith.constant 0 : index
    %c0_3 = arith.constant 0 : index
    %2 = vector.load %arg3[%c0_2, %c0_3] : memref<96x32xf32, #tpu.memory_space<vmem>>, vector<96x32xf32>
    %cst = arith.constant dense<0.000000e+00> : vector<96x8xf32>
    %3 = tpu.matmul %2, %1, %cst {dimension_numbers = #tpu.dot_dimension_numbers<[1], [1], [0], [0], [0, 0, 1, 0], [], []>} : vector<96x32xf32>, vector<8x32xf32>, vector<96x8xf32> -> vector<96x8xf32>
    %c0_4 = arith.constant 0 : index
    %c0_5 = arith.constant 0 : index
    %4 = vector.load %arg4[%c0_4, %c0_5] : memref<96x1xf32, #tpu.memory_space<vmem>>, vector<96x1xf32>
    %5 = vector.broadcast %4 : vector<96x1xf32> to vector<96x8xf32>
    %6 = arith.addf %3, %5 : vector<96x8xf32>
    %c0_6 = arith.constant 0 : index
    %7 = memref.load %arg1[%c0_6] : memref<1xf32, #tpu.memory_space<smem>>
    %8 = vector.extract_strided_slice %6 {offsets = [0, 0], sizes = [64, 8], strides = [1, 1]} : vector<96x8xf32> to vector<64x8xf32>
    %9 = vector.extract_strided_slice %6 {offsets = [64, 0], sizes = [32, 8], strides = [1, 1]} : vector<96x8xf32> to vector<32x8xf32>
    %c0_7 = arith.constant 0 : index
    %c0_8 = arith.constant 0 : index
    %10 = vector.load %arg5[%c0_7, %c0_8] : memref<32x32xf32, #tpu.memory_space<vmem>>, vector<32x32xf32>
    %c0_9 = arith.constant 0 : index
    %c0_10 = arith.constant 0 : index
    %11 = vector.load %arg6[%c0_9, %c0_10] : memref<1x32xf32, #tpu.memory_space<vmem>>, vector<1x32xf32>
    %12 = vector.shape_cast %8 : vector<64x8xf32> to vector<4x16x8xf32>
    %13 = vector.extract_strided_slice %12 {offsets = [0, 0, 0], sizes = [4, 8, 8], strides = [1, 1, 1]} : vector<4x16x8xf32> to vector<4x8x8xf32>
    %14 = vector.shape_cast %9 : vector<32x8xf32> to vector<4x8x8xf32>
    %cst_11 = arith.constant dense<0.000000e+00> : vector<4x16x8xf32>
    %15 = tpu.matmul %12, %13, %cst_11 {dimension_numbers = #tpu.dot_dimension_numbers<[2], [2], [1], [1], [0, 0, 0, 1, 1, 1], [0], [0]>} : vector<4x16x8xf32>, vector<4x8x8xf32>, vector<4x16x8xf32> -> vector<4x16x8xf32>
    %16 = tpu.iota {dimensions = array<i32: 0>} : vector<16x8xi32>
    %17 = tpu.iota {dimensions = array<i32: 1>} : vector<16x8xi32>
    %c0_i32 = arith.constant 0 : i32
    %18 = vector.broadcast %c0_i32 : i32 to vector<16x8xi32>
    %19 = arith.addi %16, %18 : vector<16x8xi32>
    %20 = arith.cmpi eq, %19, %17 : vector<16x8xi32>
    %21 = arith.extui %20 : vector<16x8xi1> to vector<16x8xi32>
    %22 = arith.sitofp %21 : vector<16x8xi32> to vector<16x8xf32>
    %23 = vector.broadcast %7 : f32 to vector<16x8xf32>
    %24 = arith.mulf %23, %22 : vector<16x8xf32>
    %25 = vector.shape_cast %24 : vector<16x8xf32> to vector<1x16x8xf32>
    %26 = vector.broadcast %25 : vector<1x16x8xf32> to vector<4x16x8xf32>
    %27 = arith.addf %15, %26 : vector<4x16x8xf32>
    %28 = tpu.iota {dimensions = array<i32: 0>} : vector<8x8xi32>
    %29 = tpu.iota {dimensions = array<i32: 1>} : vector<8x8xi32>
    %c0_i32_12 = arith.constant 0 : i32
    %30 = vector.broadcast %c0_i32_12 : i32 to vector<8x8xi32>
    %31 = arith.addi %28, %30 : vector<8x8xi32>
    %32 = arith.cmpi eq, %31, %29 : vector<8x8xi32>
    %33 = arith.extui %32 : vector<8x8xi1> to vector<8x8xi32>
    %34 = arith.sitofp %33 : vector<8x8xi32> to vector<8x8xf32>
    %35 = vector.extract_strided_slice %27 {offsets = [0, 0, 0], sizes = [4, 1, 1], strides = [1, 1, 1]} : vector<4x16x8xf32> to vector<4x1x1xf32>
    %36 = vector.extract_strided_slice %27 {offsets = [0, 0, 0], sizes = [4, 16, 1], strides = [1, 1, 1]} : vector<4x16x8xf32> to vector<4x16x1xf32>
    %37 = vector.broadcast %35 : vector<4x1x1xf32> to vector<4x16x1xf32>
    %38 = arith.divf %36, %37 : vector<4x16x1xf32>
    %39 = vector.extract_strided_slice %27 {offsets = [0, 0, 0], sizes = [4, 1, 8], strides = [1, 1, 1]} : vector<4x16x8xf32> to vector<4x1x8xf32>
    %40 = vector.extract_strided_slice %34 {offsets = [0, 0], sizes = [1, 8], strides = [1, 1]} : vector<8x8xf32> to vector<1x8xf32>
    %41 = vector.shape_cast %40 : vector<1x8xf32> to vector<1x1x8xf32>
    %42 = vector.broadcast %41 : vector<1x1x8xf32> to vector<4x1x8xf32>
    %43 = arith.subf %39, %42 : vector<4x1x8xf32>
    %44 = vector.broadcast %38 : vector<4x16x1xf32> to vector<4x16x8xf32>
    %45 = vector.broadcast %43 : vector<4x1x8xf32> to vector<4x16x8xf32>
    %46 = arith.mulf %44, %45 : vector<4x16x8xf32>
    %47 = arith.subf %27, %46 : vector<4x16x8xf32>
    %48 = vector.extract_strided_slice %47 {offsets = [0, 1, 1], sizes = [4, 1, 1], strides = [1, 1, 1]} : vector<4x16x8xf32> to vector<4x1x1xf32>
    %49 = vector.extract_strided_slice %47 {offsets = [0, 0, 1], sizes = [4, 16, 1], strides = [1, 1, 1]} : vector<4x16x8xf32> to vector<4x16x1xf32>
    %50 = vector.broadcast %48 : vector<4x1x1xf32> to vector<4x16x1xf32>
    %51 = arith.divf %49, %50 : vector<4x16x1xf32>
    %52 = vector.extract_strided_slice %47 {offsets = [0, 1, 0], sizes = [4, 1, 8], strides = [1, 1, 1]} : vector<4x16x8xf32> to vector<4x1x8xf32>
    %53 = vector.extract_strided_slice %34 {offsets = [1, 0], sizes = [1, 8], strides = [1, 1]} : vector<8x8xf32> to vector<1x8xf32>
    %54 = vector.shape_cast %53 : vector<1x8xf32> to vector<1x1x8xf32>
    %55 = vector.broadcast %54 : vector<1x1x8xf32> to vector<4x1x8xf32>
    %56 = arith.subf %52, %55 : vector<4x1x8xf32>
    %57 = vector.broadcast %51 : vector<4x16x1xf32> to vector<4x16x8xf32>
    %58 = vector.broadcast %56 : vector<4x1x8xf32> to vector<4x16x8xf32>
    %59 = arith.mulf %57, %58 : vector<4x16x8xf32>
    %60 = arith.subf %47, %59 : vector<4x16x8xf32>
    %61 = vector.extract_strided_slice %60 {offsets = [0, 2, 2], sizes = [4, 1, 1], strides = [1, 1, 1]} : vector<4x16x8xf32> to vector<4x1x1xf32>
    %62 = vector.extract_strided_slice %60 {offsets = [0, 0, 2], sizes = [4, 16, 1], strides = [1, 1, 1]} : vector<4x16x8xf32> to vector<4x16x1xf32>
    %63 = vector.broadcast %61 : vector<4x1x1xf32> to vector<4x16x1xf32>
    %64 = arith.divf %62, %63 : vector<4x16x1xf32>
    %65 = vector.extract_strided_slice %60 {offsets = [0, 2, 0], sizes = [4, 1, 8], strides = [1, 1, 1]} : vector<4x16x8xf32> to vector<4x1x8xf32>
    %66 = vector.extract_strided_slice %34 {offsets = [2, 0], sizes = [1, 8], strides = [1, 1]} : vector<8x8xf32> to vector<1x8xf32>
    %67 = vector.shape_cast %66 : vector<1x8xf32> to vector<1x1x8xf32>
    %68 = vector.broadcast %67 : vector<1x1x8xf32> to vector<4x1x8xf32>
    %69 = arith.subf %65, %68 : vector<4x1x8xf32>
    %70 = vector.broadcast %64 : vector<4x16x1xf32> to vector<4x16x8xf32>
    %71 = vector.broadcast %69 : vector<4x1x8xf32> to vector<4x16x8xf32>
    %72 = arith.mulf %70, %71 : vector<4x16x8xf32>
    %73 = arith.subf %60, %72 : vector<4x16x8xf32>
    %74 = vector.extract_strided_slice %73 {offsets = [0, 3, 3], sizes = [4, 1, 1], strides = [1, 1, 1]} : vector<4x16x8xf32> to vector<4x1x1xf32>
    %75 = vector.extract_strided_slice %73 {offsets = [0, 0, 3], sizes = [4, 16, 1], strides = [1, 1, 1]} : vector<4x16x8xf32> to vector<4x16x1xf32>
    %76 = vector.broadcast %74 : vector<4x1x1xf32> to vector<4x16x1xf32>
    %77 = arith.divf %75, %76 : vector<4x16x1xf32>
    %78 = vector.extract_strided_slice %73 {offsets = [0, 3, 0], sizes = [4, 1, 8], strides = [1, 1, 1]} : vector<4x16x8xf32> to vector<4x1x8xf32>
    %79 = vector.extract_strided_slice %34 {offsets = [3, 0], sizes = [1, 8], strides = [1, 1]} : vector<8x8xf32> to vector<1x8xf32>
    %80 = vector.shape_cast %79 : vector<1x8xf32> to vector<1x1x8xf32>
    %81 = vector.broadcast %80 : vector<1x1x8xf32> to vector<4x1x8xf32>
    %82 = arith.subf %78, %81 : vector<4x1x8xf32>
    %83 = vector.broadcast %77 : vector<4x16x1xf32> to vector<4x16x8xf32>
    %84 = vector.broadcast %82 : vector<4x1x8xf32> to vector<4x16x8xf32>
    %85 = arith.mulf %83, %84 : vector<4x16x8xf32>
    %86 = arith.subf %73, %85 : vector<4x16x8xf32>
    %87 = vector.extract_strided_slice %86 {offsets = [0, 4, 4], sizes = [4, 1, 1], strides = [1, 1, 1]} : vector<4x16x8xf32> to vector<4x1x1xf32>
    %88 = vector.extract_strided_slice %86 {offsets = [0, 0, 4], sizes = [4, 16, 1], strides = [1, 1, 1]} : vector<4x16x8xf32> to vector<4x16x1xf32>
    %89 = vector.broadcast %87 : vector<4x1x1xf32> to vector<4x16x1xf32>
    %90 = arith.divf %88, %89 : vector<4x16x1xf32>
    %91 = vector.extract_strided_slice %86 {offsets = [0, 4, 0], sizes = [4, 1, 8], strides = [1, 1, 1]} : vector<4x16x8xf32> to vector<4x1x8xf32>
    %92 = vector.extract_strided_slice %34 {offsets = [4, 0], sizes = [1, 8], strides = [1, 1]} : vector<8x8xf32> to vector<1x8xf32>
    %93 = vector.shape_cast %92 : vector<1x8xf32> to vector<1x1x8xf32>
    %94 = vector.broadcast %93 : vector<1x1x8xf32> to vector<4x1x8xf32>
    %95 = arith.subf %91, %94 : vector<4x1x8xf32>
    %96 = vector.broadcast %90 : vector<4x16x1xf32> to vector<4x16x8xf32>
    %97 = vector.broadcast %95 : vector<4x1x8xf32> to vector<4x16x8xf32>
    %98 = arith.mulf %96, %97 : vector<4x16x8xf32>
    %99 = arith.subf %86, %98 : vector<4x16x8xf32>
    %100 = vector.extract_strided_slice %99 {offsets = [0, 5, 5], sizes = [4, 1, 1], strides = [1, 1, 1]} : vector<4x16x8xf32> to vector<4x1x1xf32>
    %101 = vector.extract_strided_slice %99 {offsets = [0, 0, 5], sizes = [4, 16, 1], strides = [1, 1, 1]} : vector<4x16x8xf32> to vector<4x16x1xf32>
    %102 = vector.broadcast %100 : vector<4x1x1xf32> to vector<4x16x1xf32>
    %103 = arith.divf %101, %102 : vector<4x16x1xf32>
    %104 = vector.extract_strided_slice %99 {offsets = [0, 5, 0], sizes = [4, 1, 8], strides = [1, 1, 1]} : vector<4x16x8xf32> to vector<4x1x8xf32>
    %105 = vector.extract_strided_slice %34 {offsets = [5, 0], sizes = [1, 8], strides = [1, 1]} : vector<8x8xf32> to vector<1x8xf32>
    %106 = vector.shape_cast %105 : vector<1x8xf32> to vector<1x1x8xf32>
    %107 = vector.broadcast %106 : vector<1x1x8xf32> to vector<4x1x8xf32>
    %108 = arith.subf %104, %107 : vector<4x1x8xf32>
    %109 = vector.broadcast %103 : vector<4x16x1xf32> to vector<4x16x8xf32>
    %110 = vector.broadcast %108 : vector<4x1x8xf32> to vector<4x16x8xf32>
    %111 = arith.mulf %109, %110 : vector<4x16x8xf32>
    %112 = arith.subf %99, %111 : vector<4x16x8xf32>
    %113 = vector.extract_strided_slice %112 {offsets = [0, 6, 6], sizes = [4, 1, 1], strides = [1, 1, 1]} : vector<4x16x8xf32> to vector<4x1x1xf32>
    %114 = vector.extract_strided_slice %112 {offsets = [0, 0, 6], sizes = [4, 16, 1], strides = [1, 1, 1]} : vector<4x16x8xf32> to vector<4x16x1xf32>
    %115 = vector.broadcast %113 : vector<4x1x1xf32> to vector<4x16x1xf32>
    %116 = arith.divf %114, %115 : vector<4x16x1xf32>
    %117 = vector.extract_strided_slice %112 {offsets = [0, 6, 0], sizes = [4, 1, 8], strides = [1, 1, 1]} : vector<4x16x8xf32> to vector<4x1x8xf32>
    %118 = vector.extract_strided_slice %34 {offsets = [6, 0], sizes = [1, 8], strides = [1, 1]} : vector<8x8xf32> to vector<1x8xf32>
    %119 = vector.shape_cast %118 : vector<1x8xf32> to vector<1x1x8xf32>
    %120 = vector.broadcast %119 : vector<1x1x8xf32> to vector<4x1x8xf32>
    %121 = arith.subf %117, %120 : vector<4x1x8xf32>
    %122 = vector.broadcast %116 : vector<4x16x1xf32> to vector<4x16x8xf32>
    %123 = vector.broadcast %121 : vector<4x1x8xf32> to vector<4x16x8xf32>
    %124 = arith.mulf %122, %123 : vector<4x16x8xf32>
    %125 = arith.subf %112, %124 : vector<4x16x8xf32>
    %126 = vector.extract_strided_slice %125 {offsets = [0, 7, 7], sizes = [4, 1, 1], strides = [1, 1, 1]} : vector<4x16x8xf32> to vector<4x1x1xf32>
    %127 = vector.extract_strided_slice %125 {offsets = [0, 0, 7], sizes = [4, 16, 1], strides = [1, 1, 1]} : vector<4x16x8xf32> to vector<4x16x1xf32>
    %128 = vector.broadcast %126 : vector<4x1x1xf32> to vector<4x16x1xf32>
    %129 = arith.divf %127, %128 : vector<4x16x1xf32>
    %130 = vector.extract_strided_slice %125 {offsets = [0, 7, 0], sizes = [4, 1, 8], strides = [1, 1, 1]} : vector<4x16x8xf32> to vector<4x1x8xf32>
    %131 = vector.extract_strided_slice %34 {offsets = [7, 0], sizes = [1, 8], strides = [1, 1]} : vector<8x8xf32> to vector<1x8xf32>
    %132 = vector.shape_cast %131 : vector<1x8xf32> to vector<1x1x8xf32>
    %133 = vector.broadcast %132 : vector<1x1x8xf32> to vector<4x1x8xf32>
    %134 = arith.subf %130, %133 : vector<4x1x8xf32>
    %135 = vector.broadcast %129 : vector<4x16x1xf32> to vector<4x16x8xf32>
    %136 = vector.broadcast %134 : vector<4x1x8xf32> to vector<4x16x8xf32>
    %137 = arith.mulf %135, %136 : vector<4x16x8xf32>
    %138 = arith.subf %125, %137 : vector<4x16x8xf32>
    %139 = vector.extract_strided_slice %138 {offsets = [0, 8, 0], sizes = [4, 8, 8], strides = [1, 1, 1]} : vector<4x16x8xf32> to vector<4x8x8xf32>
    %cst_13 = arith.constant dense<0xFF800000> : vector<4x8xf32>
    %140 = vector.multi_reduction <maximumf>, %139, %cst_13 [1] : vector<4x8x8xf32> to vector<4x8xf32>
    %141 = vector.shape_cast %140 : vector<4x8xf32> to vector<4x1x8xf32>
    %142 = vector.broadcast %141 : vector<4x1x8xf32> to vector<4x8x8xf32>
    %143 = arith.subf %139, %142 : vector<4x8x8xf32>
    %144 = math.exp %143 : vector<4x8x8xf32>
    %cst_14 = arith.constant dense<0.000000e+00> : vector<4x8xf32>
    %145 = vector.multi_reduction <add>, %144, %cst_14 [1] : vector<4x8x8xf32> to vector<4x8xf32>
    %146 = vector.shape_cast %145 : vector<4x8xf32> to vector<4x1x8xf32>
    %147 = vector.broadcast %146 : vector<4x1x8xf32> to vector<4x8x8xf32>
    %148 = arith.divf %144, %147 : vector<4x8x8xf32>
    %cst_15 = arith.constant dense<0.000000e+00> : vector<4x8x8xf32>
    %149 = tpu.matmul %148, %14, %cst_15 {dimension_numbers = #tpu.dot_dimension_numbers<[2], [1], [1], [2], [0, 0, 0, 1, 1, 2], [0], [0]>} : vector<4x8x8xf32>, vector<4x8x8xf32>, vector<4x8x8xf32> -> vector<4x8x8xf32>
    %150 = vector.shape_cast %149 : vector<4x8x8xf32> to vector<32x8xf32>
    %151 = tpu.transpose %150, [1, 0] : vector<32x8xf32> -> vector<8x32xf32>
    %cst_16 = arith.constant dense<0.000000e+00> : vector<8x32xf32>
    %152 = tpu.matmul %151, %10, %cst_16 {dimension_numbers = #tpu.dot_dimension_numbers<[1], [1], [0], [0], [0, 0, 1, 0], [], []>} : vector<8x32xf32>, vector<32x32xf32>, vector<8x32xf32> -> vector<8x32xf32>
    %153 = vector.broadcast %11 : vector<1x32xf32> to vector<8x32xf32>
    %154 = arith.addf %152, %153 : vector<8x32xf32>
    %c0_17 = arith.constant 0 : index
    %c0_18 = arith.constant 0 : index
    %c0_19 = arith.constant 0 : index
    %155 = vector.load %arg7[%c0_17, %c0_18, %c0_19] : memref<1x8x32xf32, #tpu.memory_space<vmem>>, vector<1x8x32xf32>
    %156 = vector.shape_cast %155 : vector<1x8x32xf32> to vector<8x32xf32>
    %157 = vector.shape_cast %154 : vector<8x32xf32> to vector<1x8x32xf32>
    tpu.vector_store %arg7[%c0_17, %c0_18, %c0_19], %157 {strides = array<i32>} : memref<1x8x32xf32, #tpu.memory_space<vmem>>, vector<1x8x32xf32>,
    return
  }
  func.func @transform_0(%arg0: i32) -> i32 {
    %c0_i32 = arith.constant 0 : i32
    %c0_i32_0 = arith.constant 0 : i32
    return %c0_i32 : i32
  }
  func.func @transform_1(%arg0: i32) -> (i32, i32, i32) {
    %c0_i32 = arith.constant 0 : i32
    %c0_i32_0 = arith.constant 0 : i32
    %c0_i32_1 = arith.constant 0 : i32
    return %arg0, %c0_i32, %c0_i32_0 : i32, i32, i32
  }
  func.func @transform_2(%arg0: i32) -> (i32, i32) {
    %c0_i32 = arith.constant 0 : i32
    %c0_i32_0 = arith.constant 0 : i32
    %c0_i32_1 = arith.constant 0 : i32
    return %c0_i32, %c0_i32_0 : i32, i32
  }
  func.func @transform_3(%arg0: i32) -> (i32, i32) {
    %c0_i32 = arith.constant 0 : i32
    %c0_i32_0 = arith.constant 0 : i32
    %c0_i32_1 = arith.constant 0 : i32
    return %c0_i32, %c0_i32_0 : i32, i32
  }
  func.func @transform_4(%arg0: i32) -> (i32, i32) {
    %c0_i32 = arith.constant 0 : i32
    %c0_i32_0 = arith.constant 0 : i32
    %c0_i32_1 = arith.constant 0 : i32
    return %c0_i32, %c0_i32_0 : i32, i32
  }
  func.func @transform_5(%arg0: i32) -> (i32, i32) {
    %c0_i32 = arith.constant 0 : i32
    %c0_i32_0 = arith.constant 0 : i32
    %c0_i32_1 = arith.constant 0 : i32
    return %c0_i32, %c0_i32_0 : i32, i32
  }
  func.func @transform_6(%arg0: i32) -> (i32, i32, i32) {
    %c0_i32 = arith.constant 0 : i32
    %c0_i32_0 = arith.constant 0 : i32
    %c0_i32_1 = arith.constant 0 : i32
    return %arg0, %c0_i32, %c0_i32_0 : i32, i32, i32
  }
}

</mosaic_0001>

<llo_original>
// kernel: tpu_custom_call.1
$region0: #{tpu_custom_call.1}
  #allocation0 [shape = 'u32[]', space=smem, size = 0x4, offset = 0x4, fixed_abs, tag = 'smem constant byte address 0x4 - core index']
  #allocation1 [shape = 'u32[72,128]{1,0:T(1,128)}', space=vmem, size = 0x9000, scoped, tag = 'internal scratch']
  #allocation2 [shape = 'f32[1]{0:T(128)S(6)}', space=smem, size = 0x200, scoped, tag = 'scoped memory for tpu_custom_call.1']
  %s0 = inlined_call_operand.<no memory space> [shape: f32[1], index: 0, kind: input, shape index: {}]
  %s1 = inlined_call_operand.vmem [shape: f32[2,8,32], index: 1, kind: input, shape index: {}]
  %s2 = inlined_call_operand.vmem [shape: f32[96,32], index: 2, kind: input, shape index: {}]
  %s3 = inlined_call_operand.vmem [shape: f32[96,1], index: 3, kind: input, shape index: {}]
  %s4 = inlined_call_operand.vmem [shape: f32[32,32], index: 4, kind: input, shape index: {}]
  %s5 = inlined_call_operand.vmem [shape: f32[1,32], index: 5, kind: input, shape index: {}]
  %s6 = inlined_call_operand.hbm [shape: f32[2,8,32], index: 6, kind: output, shape index: {}]
  %s7 = sld [smem:[#allocation0]]
  $region57: #{tpu_custom_call.1} parent=0
    _
  %s9 = ssub.s32 1, %s7
  %s10 = scalar_select 0, %s9, %s7
  %11 = sst [smem:[#allocation2]] %s0
  $region1: #{tpu_custom_call.1} parent=0
    #allocation3 [shape = 'u8[8192]{0}', space=vmem, size = 0x2000, scoped, tag = 'output window, operand 0']
    #allocation4 [shape = 's32[2]{0}', space=sflag, size = 0x8, scoped, tag = 'scoped memory for tpu_custom_call.1']
    %12 = vsyncpa [#allocation4], 0
    %s13 = scalar_lea.sflag [#allocation4], 1
    %14 = vsyncpa %s13, 0
    loop: start=0, step=1, limit=4
    $region2: #{tpu_custom_call.1} parent=1 // loop_pre_header
      _
    $region3: #{tpu_custom_call.1} parent=1 // loop_header
      %s16 = sphi 0, %s20
      %p17 = scmp.ge.s32.totalorder %s16, 4
      %s24 = sphi 0, %s24
      %s26 = sphi 0, %s24
      %s27 = sphi 0, %s26
      %s41 = sphi 0, %s27
      %s47 = sphi 0, %s49
      %s50 = sphi 0, %s47
      %s51 = sphi 0, %s50
      %s67 = sphi 0, %s51
      %s71 = sphi 0, %s71
      %s73 = sphi 0, %s71
      %s74 = sphi 0, %s73
      %s88 = sphi 0, %s74
      %s92 = sphi 0, %s92
      %s94 = sphi 0, %s92
      %s95 = sphi 0, %s94
      %s109 = sphi 0, %s95
      %s113 = sphi 0, %s113
      %s115 = sphi 0, %s113
      %s116 = sphi 0, %s115
      %s130 = sphi 0, %s116
      %s134 = sphi 0, %s134
      %s136 = sphi 0, %s134
      %s137 = sphi 0, %s136
      %s151 = sphi 0, %s137
      %s157 = sphi 0, %s159
      %s160 = sphi 0, %s157
      %s161 = sphi 0, %s160
      %s177 = sphi 0, %s161
    $region4: #{tpu_custom_call.1} parent=1 // loop_header_branch
      %19 = sbr.rel (%p17) target = $region8
    $region5: #{tpu_custom_call.1} parent=1 // loop_body
      %s21 = ssub.s32 %s16, 1
      %s22 = ssub.s32 %s16, 2
      %s23 = sadd.s32 %s16, 1
      %s25 = sadd.s32 %s24, 1
      %p28 = scmp.eq.s32.totalorder %s16, 1
      %p29 = scmp.ne.s32.totalorder %s24, %s26
      %p30 = scmp.eq.s32.totalorder %s16, 0
      %p31 = por %p29, %p30
      %p32 = scmp.ne.s32.totalorder %s24, %s26
      %p33 = scmp.eq.s32.totalorder %s21, 1
      %p34 = por %p32, %p33
      %p35 = scmp.ne.s32.totalorder %s26, %s27
      %p36 = scmp.eq.s32.totalorder %s21, 0
      %p37 = por %p35, %p36
      %p38 = scmp.ne.s32.totalorder %s26, %s27
      %p39 = scmp.eq.s32.totalorder %s22, 1
      %p40 = por %p38, %p39
      %p42 = scmp.ne.s32.totalorder %s27, %s41
      %p43 = scmp.eq.s32.totalorder %s22, 0
      %p44 = por %p42, %p43
      %s45 = ssub.s32 %s16, %s23
      %p46 = scmp.eq.s32.totalorder %s45, 0
      %s48 = sadd.s32 %s47, 1
      %s49 = scalar_select %p46, %s47, %s48
      %p52 = pneg %p46
      %p53 = scmp.eq.s32.totalorder %s16, 1
      %p54 = por %p52, %p53
      %p55 = scmp.ne.s32.totalorder %s47, %s50
      %p56 = scmp.eq.s32.totalorder %s16, 0
      %p57 = por %p55, %p56
      %p58 = scmp.ne.s32.totalorder %s47, %s50
      %p59 = scmp.eq.s32.totalorder %s21, 1
      %p60 = por %p58, %p59
      %p61 = scmp.ne.s32.totalorder %s50, %s51
      %p62 = scmp.eq.s32.totalorder %s21, 0
      %p63 = por %p61, %p62
      %p64 = scmp.ne.s32.totalorder %s50, %s51
      %p65 = scmp.eq.s32.totalorder %s22, 1
      %p66 = por %p64, %p65
      %p68 = scmp.ne.s32.totalorder %s51, %s67
      %p69 = scmp.eq.s32.totalorder %s22, 0
      %p70 = por %p68, %p69
      %s72 = sadd.s32 %s71, 1
      %p75 = scmp.eq.s32.totalorder %s16, 1
      %p76 = scmp.ne.s32.totalorder %s71, %s73
      %p77 = scmp.eq.s32.totalorder %s16, 0
      %p78 = por %p76, %p77
      %p79 = scmp.ne.s32.totalorder %s71, %s73
      %p80 = scmp.eq.s32.totalorder %s21, 1
      %p81 = por %p79, %p80
      %p82 = scmp.ne.s32.totalorder %s73, %s74
      %p83 = scmp.eq.s32.totalorder %s21, 0
      %p84 = por %p82, %p83
      %p85 = scmp.ne.s32.totalorder %s73, %s74
      %p86 = scmp.eq.s32.totalorder %s22, 1
      %p87 = por %p85, %p86
      %p89 = scmp.ne.s32.totalorder %s74, %s88
      %p90 = scmp.eq.s32.totalorder %s22, 0
      %p91 = por %p89, %p90
      %s93 = sadd.s32 %s92, 1
      %p96 = scmp.eq.s32.totalorder %s16, 1
      %p97 = scmp.ne.s32.totalorder %s92, %s94
      %p98 = scmp.eq.s32.totalorder %s16, 0
      %p99 = por %p97, %p98
      %p100 = scmp.ne.s32.totalorder %s92, %s94
      %p101 = scmp.eq.s32.totalorder %s21, 1
      %p102 = por %p100, %p101
      %p103 = scmp.ne.s32.totalorder %s94, %s95
      %p104 = scmp.eq.s32.totalorder %s21, 0
      %p105 = por %p103, %p104
      %p106 = scmp.ne.s32.totalorder %s94, %s95
      %p107 = scmp.eq.s32.totalorder %s22, 1
      %p108 = por %p106, %p107
      %p110 = scmp.ne.s32.totalorder %s95, %s109
      %p111 = scmp.eq.s32.totalorder %s22, 0
      %p112 = por %p110, %p111
      %s114 = sadd.s32 %s113, 1
      %p117 = scmp.eq.s32.totalorder %s16, 1
      %p118 = scmp.ne.s32.totalorder %s113, %s115
      %p119 = scmp.eq.s32.totalorder %s16, 0
      %p120 = por %p118, %p119
      %p121 = scmp.ne.s32.totalorder %s113, %s115
      %p122 = scmp.eq.s32.totalorder %s21, 1
      %p123 = por %p121, %p122
      %p124 = scmp.ne.s32.totalorder %s115, %s116
      %p125 = scmp.eq.s32.totalorder %s21, 0
      %p126 = por %p124, %p125
      %p127 = scmp.ne.s32.totalorder %s115, %s116
      %p128 = scmp.eq.s32.totalorder %s22, 1
      %p129 = por %p127, %p128
      %p131 = scmp.ne.s32.totalorder %s116, %s130
      %p132 = scmp.eq.s32.totalorder %s22, 0
      %p133 = por %p131, %p132
      %s135 = sadd.s32 %s134, 1
      %p138 = scmp.eq.s32.totalorder %s16, 1
      %p139 = scmp.ne.s32.totalorder %s134, %s136
      %p140 = scmp.eq.s32.totalorder %s16, 0
      %p141 = por %p139, %p140
      %p142 = scmp.ne.s32.totalorder %s134, %s136
      %p143 = scmp.eq.s32.totalorder %s21, 1
      %p144 = por %p142, %p143
      %p145 = scmp.ne.s32.totalorder %s136, %s137
      %p146 = scmp.eq.s32.totalorder %s21, 0
      %p147 = por %p145, %p146
      %p148 = scmp.ne.s32.totalorder %s136, %s137
      %p149 = scmp.eq.s32.totalorder %s22, 1
      %p150 = por %p148, %p149
      %p152 = scmp.ne.s32.totalorder %s137, %s151
      %p153 = scmp.eq.s32.totalorder %s22, 0
      %p154 = por %p152, %p153
      %s155 = ssub.s32 %s16, %s23
      %p156 = scmp.eq.s32.totalorder %s155, 0
      %s158 = sadd.s32 %s157, 1
      %s159 = scalar_select %p156, %s157, %s158
      %p162 = pneg %p156
      %p163 = scmp.eq.s32.totalorder %s16, 1
      %p164 = por %p162, %p163
      %p165 = scmp.ne.s32.totalorder %s157, %s160
      %p166 = scmp.eq.s32.totalorder %s16, 0
      %p167 = por %p165, %p166
      %p168 = scmp.ne.s32.totalorder %s157, %s160
      %p169 = scmp.eq.s32.totalorder %s21, 1
      %p170 = por %p168, %p169
      %p171 = scmp.ne.s32.totalorder %s160, %s161
      %p172 = scmp.eq.s32.totalorder %s21, 0
      %p173 = por %p171, %p172
      %p174 = scmp.ne.s32.totalorder %s160, %s161
      %p175 = scmp.eq.s32.totalorder %s22, 1
      %p176 = por %p174, %p175
      %p178 = scmp.ne.s32.totalorder %s161, %s177
      %p179 = scmp.eq.s32.totalorder %s22, 0
      %p180 = por %p178, %p179
      %p181 = scmp.le.s32.totalorder 1, %s16
      %p182 = scmp.lt.s32.totalorder %s16, 3
      %p183 = pnand %p181, %p182
      %p184 = pneg %p183
      // Predicated region
      $region9: #{tpu_custom_call.1} parent=5 // pred_check
        _
      $region10: #{tpu_custom_call.1} parent=5 // pred_check_branch
        %186 = sbr.rel (%p183) target = $region12
      $region11: #{tpu_custom_call.1} parent=5 // pred_region
        %s187 = ssub.s32 %s16, 1
        // Predicated region
        $region13: #{tpu_custom_call.1} parent=11 // pred_check
          %p188 = pneg %p37
        $region14: #{tpu_custom_call.1} parent=11 // pred_check_branch
          %190 = sbr.rel (%p188) target = $region16
        $region15: #{tpu_custom_call.1} parent=11 // pred_region
          _
        $region16: #{tpu_custom_call.1} parent=11 // pred_fallthru
          _
        // Predicated region
        $region17: #{tpu_custom_call.1} parent=11 // pred_check
          %p191 = pneg %p84
        $region18: #{tpu_custom_call.1} parent=11 // pred_check_branch
          %193 = sbr.rel (%p191) target = $region20
        $region19: #{tpu_custom_call.1} parent=11 // pred_region
          _
        $region20: #{tpu_custom_call.1} parent=11 // pred_fallthru
          _
        // Predicated region
        $region21: #{tpu_custom_call.1} parent=11 // pred_check
          %p194 = pneg %p105
        $region22: #{tpu_custom_call.1} parent=11 // pred_check_branch
          %196 = sbr.rel (%p194) target = $region24
        $region23: #{tpu_custom_call.1} parent=11 // pred_region
          _
        $region24: #{tpu_custom_call.1} parent=11 // pred_fallthru
          _
        // Predicated region
        $region25: #{tpu_custom_call.1} parent=11 // pred_check
          %p197 = pneg %p126
        $region26: #{tpu_custom_call.1} parent=11 // pred_check_branch
          %199 = sbr.rel (%p197) target = $region28
        $region27: #{tpu_custom_call.1} parent=11 // pred_region
          _
        $region28: #{tpu_custom_call.1} parent=11 // pred_fallthru
          _
        // Predicated region
        $region29: #{tpu_custom_call.1} parent=11 // pred_check
          %p200 = pneg %p147
        $region30: #{tpu_custom_call.1} parent=11 // pred_check_branch
          %202 = sbr.rel (%p200) target = $region32
        $region31: #{tpu_custom_call.1} parent=11 // pred_region
          _
        $region32: #{tpu_custom_call.1} parent=11 // pred_fallthru
          _
      $region12: #{tpu_custom_call.1} parent=5 // pred_fallthru
        _
      %p203 = scmp.lt.s32.totalorder %s16, 2
      // Predicated region
      $region33: #{tpu_custom_call.1} parent=5 // pred_check
        %p204 = pneg %p203
      $region34: #{tpu_custom_call.1} parent=5 // pred_check_branch
        %206 = sbr.rel (%p204) target = $region36
      $region35: #{tpu_custom_call.1} parent=5 // pred_region
        // Predicated region
        $region37: #{tpu_custom_call.1} parent=35 // pred_check
          %p207 = pneg %p57
        $region38: #{tpu_custom_call.1} parent=35 // pred_check_branch
          %209 = sbr.rel (%p207) target = $region40
        $region39: #{tpu_custom_call.1} parent=35 // pred_region
          %p210 = scmp.lt.s32.totalorder %s16, 1
          %s211 = scalar_select %p210, %s16, 1
          %s212 = smul.addr %s211, 8
          %s213 = scalar_lea.vmem %s1, %s212
        $region40: #{tpu_custom_call.1} parent=35 // pred_fallthru
          _
      $region36: #{tpu_custom_call.1} parent=5 // pred_fallthru
        _
      %p214 = scmp.le.s32.totalorder 1, %s16
      %p215 = scmp.lt.s32.totalorder %s16, 3
      %p216 = pnand %p214, %p215
      %p217 = pneg %p216
      // Predicated region
      $region41: #{tpu_custom_call.1} parent=5 // pred_check
        _
      $region42: #{tpu_custom_call.1} parent=5 // pred_check_branch
        %219 = sbr.rel (%p216) target = $region44
      $region43: #{tpu_custom_call.1} parent=5 // pred_region
        %s220 = ssub.s32 %s16, 1
        %p221 = pneg %p37
        %p222 = pneg %p34
        %p223 = scmp.lt.s32.totalorder %s21, 1
        %s224 = scalar_select %p223, %s21, 1
        %s225 = smul.addr %s224, 8
        %s226 = scalar_lea.vmem %s1, %s225
        %p227 = pneg %p63
        %p228 = pneg %p60
        %p229 = pneg %p84
        %p230 = pneg %p81
        %p231 = pneg %p105
        %p232 = pneg %p102
        %p233 = pneg %p126
        %p234 = pneg %p123
        %p235 = pneg %p147
        %p236 = pneg %p144
        %p237 = pneg %p173
        %p238 = pneg %p170
        %s239 = sand.u32 %s160, 1
        %s240 = scalar_lea.sflag [#allocation4], %s239
        %s241 = sand.u32 %s160, 1
        %s242 = smul.addr %s241, 8
        %s243 = scalar_lea.vmem [#allocation3], %s242
        %p244 = scmp.lt.s32.totalorder %s21, 1
        %s245 = scalar_select %p244, %s21, 1
        %s246 = smul.addr %s245, 8
        %s247 = scalar_lea.vmem %s1, %s246
        %v248 = vld [vmem:[%s247] sm:$0xff]
        %v249 = vld [vmem:[%s2] sm:$0xff]
        %v250 = vld [vmem:[%s2 + $0x8] sm:$0xff]
        %v251 = vld [vmem:[%s2 + $0x10] sm:$0xff]
        %v252 = vld [vmem:[%s2 + $0x18] sm:$0xff]
        %v253 = vld [vmem:[%s2 + $0x20] sm:$0xff]
        %v254 = vld [vmem:[%s2 + $0x28] sm:$0xff]
        %v255 = vld [vmem:[%s2 + $0x30] sm:$0xff]
        %v256 = vld [vmem:[%s2 + $0x38] sm:$0xff]
        %v257 = vld [vmem:[%s2 + $0x40] sm:$0xff]
        %v258 = vld [vmem:[%s2 + $0x48] sm:$0xff]
        %v259 = vld [vmem:[%s2 + $0x50] sm:$0xff]
        %v260 = vld [vmem:[%s2 + $0x58] sm:$0xff]
        %v261 = vld [vmem:[%s3] sm:$0xff]
        %v262 = vld [vmem:[%s3 + $0x8] sm:$0xff]
        %v263 = vld [vmem:[%s3 + $0x10] sm:$0xff]
        %v264 = vld [vmem:[%s3 + $0x18] sm:$0xff]
        %v265 = vld [vmem:[%s3 + $0x20] sm:$0xff]
        %v266 = vld [vmem:[%s3 + $0x28] sm:$0xff]
        %v267 = vld [vmem:[%s3 + $0x30] sm:$0xff]
        %v268 = vld [vmem:[%s3 + $0x38] sm:$0xff]
        %v269 = vld [vmem:[%s3 + $0x40] sm:$0xff]
        %v270 = vld [vmem:[%s3 + $0x48] sm:$0xff]
        %v271 = vld [vmem:[%s3 + $0x50] sm:$0xff]
        %v272 = vld [vmem:[%s3 + $0x58] sm:$0xff]
        %274 = vset.pattern.permute.xlu0 0
        %275 = vperm.xlu0 %274, %v261
        %v276 = vpop.permute.xlu0 %275
        %279 = vset.pattern.permute.xlu0 0
        %280 = vperm.xlu0 %279, %v262
        %v281 = vpop.permute.xlu0 %280
        %284 = vset.pattern.permute.xlu0 0
        %285 = vperm.xlu0 %284, %v263
        %v286 = vpop.permute.xlu0 %285
        %289 = vset.pattern.permute.xlu0 0
        %290 = vperm.xlu0 %289, %v264
        %v291 = vpop.permute.xlu0 %290
        %294 = vset.pattern.permute.xlu0 0
        %295 = vperm.xlu0 %294, %v265
        %v296 = vpop.permute.xlu0 %295
        %299 = vset.pattern.permute.xlu0 0
        %300 = vperm.xlu0 %299, %v266
        %v301 = vpop.permute.xlu0 %300
        %304 = vset.pattern.permute.xlu0 0
        %305 = vperm.xlu0 %304, %v267
        %v306 = vpop.permute.xlu0 %305
        %309 = vset.pattern.permute.xlu0 0
        %310 = vperm.xlu0 %309, %v268
        %v311 = vpop.permute.xlu0 %310
        %314 = vset.pattern.permute.xlu0 0
        %315 = vperm.xlu0 %314, %v269
        %v316 = vpop.permute.xlu0 %315
        %319 = vset.pattern.permute.xlu0 0
        %320 = vperm.xlu0 %319, %v270
        %v321 = vpop.permute.xlu0 %320
        %324 = vset.pattern.permute.xlu0 0
        %325 = vperm.xlu0 %324, %v271
        %v326 = vpop.permute.xlu0 %325
        %329 = vset.pattern.permute.xlu0 0
        %330 = vperm.xlu0 %329, %v272
        %v331 = vpop.permute.xlu0 %330
        %vm333 = vcmask 261120
        %v335 = vsel %vm333, %v249, 0
        %v338 = vsel %vm333, %v250, 0
        %v341 = vsel %vm333, %v251, 0
        %v344 = vsel %vm333, %v252, 0
        %v347 = vsel %vm333, %v253, 0
        %v350 = vsel %vm333, %v254, 0
        %v353 = vsel %vm333, %v255, 0
        %v356 = vsel %vm333, %v256, 0
        %v359 = vsel %vm333, %v257, 0
        %v362 = vsel %vm333, %v258, 0
        %v365 = vsel %vm333, %v259, 0
        %v368 = vsel %vm333, %v260, 0
        %v371 = vsel %vm333, %v248, 0
        %373 = vmatpush.xpose.msra.mxu0 0.0
        %374 = vmatpush.xpose.msra.mxu0 0.0
        %375 = vmatpush.xpose.msra.mxu0 0.0
        %376 = vmatpush.xpose.msra.mxu0 0.0
        %377 = vmatpush.xpose.msra.mxu0 0.0
        %378 = vmatpush.xpose.msra.mxu0 0.0
        %379 = vmatpush.xpose.msra.mxu0 0.0
        %380 = vmatpush.xpose.msra.mxu0 0.0
        %381 = vmatpush.xpose.msra.mxu0 0.0
        %382 = vmatpush.xpose.msra.mxu0 0.0
        %383 = vmatpush.xpose.msra.mxu0 0.0
        %384 = vmatpush.xpose.msra.mxu0 0.0
        %385 = vmatpush.xpose.msra.mxu0 0.0
        %386 = vmatpush.xpose.msra.mxu0 0.0
        %387 = vmatpush.xpose.msra.mxu0 0.0
        %388 = vmatpush.xpose.msra.mxu0 %v371
        %389 = vmatmul.f32.gmra.mxu0 %v335
        %v390 = vpop.f32.mrf.mxu0
        %v391 = vadd.f32 %v276, %v390
        %392 = vmatmul.f32.gmra.mxu0 %v338
        %v393 = vpop.f32.mrf.mxu0
        %v394 = vadd.f32 %v281, %v393
        %395 = vmatmul.f32.gmra.mxu0 %v341
        %v396 = vpop.f32.mrf.mxu0
        %v397 = vadd.f32 %v286, %v396
        %398 = vmatmul.f32.gmra.mxu0 %v344
        %v399 = vpop.f32.mrf.mxu0
        %v400 = vadd.f32 %v291, %v399
        %401 = vmatmul.f32.gmra.mxu0 %v347
        %v402 = vpop.f32.mrf.mxu0
        %v403 = vadd.f32 %v296, %v402
        %404 = vmatmul.f32.gmra.mxu0 %v350
        %v405 = vpop.f32.mrf.mxu0
        %v406 = vadd.f32 %v301, %v405
        %407 = vmatmul.f32.gmra.mxu0 %v353
        %v408 = vpop.f32.mrf.mxu0
        %v409 = vadd.f32 %v306, %v408
        %410 = vmatmul.f32.gmra.mxu0 %v356
        %v411 = vpop.f32.mrf.mxu0
        %v412 = vadd.f32 %v311, %v411
        %413 = vmatmul.f32.gmra.mxu0 %v359
        %v414 = vpop.f32.mrf.mxu0
        %v415 = vadd.f32 %v316, %v414
        %416 = vmatmul.f32.gmra.mxu0 %v362
        %v417 = vpop.f32.mrf.mxu0
        %v418 = vadd.f32 %v321, %v417
        %419 = vmatmul.f32.gmra.mxu0 %v365
        %v420 = vpop.f32.mrf.mxu0
        %v421 = vadd.f32 %v326, %v420
        %422 = vmatmul.f32.gmra.mxu0 %v368
        %v423 = vpop.f32.mrf.mxu0
        %v424 = vadd.f32 %v331, %v423
        %425 = vdwg.mxu0
        %s426 = sld [smem:[#allocation2]]
        %v427 = vld [vmem:[%s4] sm:$0xff]
        %v428 = vld [vmem:[%s4 + $0x8] sm:$0xff]
        %v429 = vld [vmem:[%s4 + $0x10] sm:$0xff]
        %v430 = vld [vmem:[%s4 + $0x18] sm:$0xff]
        %v431 = vld [vmem:[%s5] sm:$0x1]
        %v432 = vlaneseq
        %v433 = vshrl.u32 %v432, 7
        %v434 = vadd.s32 %v433, 8
        %v435 = vlaneseq
        %v436 = vand.u32 %v435, 127
        %vm437 = vcmp.eq.s32.totalorder %v433, %v436
        %vm438 = vcmp.eq.s32.totalorder %v434, %v436
        %v439 = vsel %vm437, 1, 0
        %v440 = vsel %vm438, 1, 0
        %v441 = vcvt.s32.f32 %v439
        %v442 = vcvt.s32.f32 %v440
        %v443 = vstv %s426
        %v444 = vmul.f32 %v443, %v441
        %v445 = vmul.f32 %v443, %v442
        %vm446 = vcmask 64512
        %v448 = vsel %vm446, %v391, 0
        %v451 = vsel %vm446, %v394, 0
        %453 = vmatpush.xpose.msra.mxu0 0.0
        %454 = vmatpush.xpose.msra.mxu0 0.0
        %455 = vmatpush.xpose.msra.mxu0 0.0
        %456 = vmatpush.xpose.msra.mxu0 0.0
        %457 = vmatpush.xpose.msra.mxu0 0.0
        %458 = vmatpush.xpose.msra.mxu0 0.0
        %459 = vmatpush.xpose.msra.mxu0 0.0
        %460 = vmatpush.xpose.msra.mxu0 0.0
        %461 = vmatpush.xpose.msra.mxu0 0.0
        %462 = vmatpush.xpose.msra.mxu0 0.0
        %463 = vmatpush.xpose.msra.mxu0 0.0
        %464 = vmatpush.xpose.msra.mxu0 0.0
        %465 = vmatpush.xpose.msra.mxu0 0.0
        %466 = vmatpush.xpose.msra.mxu0 0.0
        %467 = vmatpush.xpose.msra.mxu0 0.0
        %468 = vmatpush.xpose.msra.mxu0 %v448
        %469 = vmatmul.f32.gmra.mxu0 %v448
        %v470 = vpop.f32.mrf.mxu0
        %v471 = vadd.f32 %v444, %v470
        %472 = vmatmul.f32.gmra.mxu0 %v451
        %v473 = vpop.f32.mrf.mxu0
        %v474 = vadd.f32 %v445, %v473
        %475 = vdwg.mxu0
        %v477 = vsel %vm446, %v397, 0
        %v480 = vsel %vm446, %v400, 0
        %482 = vmatpush.xpose.msra.mxu0 0.0
        %483 = vmatpush.xpose.msra.mxu0 0.0
        %484 = vmatpush.xpose.msra.mxu0 0.0
        %485 = vmatpush.xpose.msra.mxu0 0.0
        %486 = vmatpush.xpose.msra.mxu0 0.0
        %487 = vmatpush.xpose.msra.mxu0 0.0
        %488 = vmatpush.xpose.msra.mxu0 0.0
        %489 = vmatpush.xpose.msra.mxu0 0.0
        %490 = vmatpush.xpose.msra.mxu0 0.0
        %491 = vmatpush.xpose.msra.mxu0 0.0
        %492 = vmatpush.xpose.msra.mxu0 0.0
        %493 = vmatpush.xpose.msra.mxu0 0.0
        %494 = vmatpush.xpose.msra.mxu0 0.0
        %495 = vmatpush.xpose.msra.mxu0 0.0
        %496 = vmatpush.xpose.msra.mxu0 0.0
        %497 = vmatpush.xpose.msra.mxu0 %v477
        %498 = vmatmul.f32.gmra.mxu0 %v477
        %v499 = vpop.f32.mrf.mxu0
        %v500 = vadd.f32 %v444, %v499
        %501 = vmatmul.f32.gmra.mxu0 %v480
        %v502 = vpop.f32.mrf.mxu0
        %v503 = vadd.f32 %v445, %v502
        %504 = vdwg.mxu0
        %v506 = vsel %vm446, %v403, 0
        %v509 = vsel %vm446, %v406, 0
        %511 = vmatpush.xpose.msra.mxu0 0.0
        %512 = vmatpush.xpose.msra.mxu0 0.0
        %513 = vmatpush.xpose.msra.mxu0 0.0
        %514 = vmatpush.xpose.msra.mxu0 0.0
        %515 = vmatpush.xpose.msra.mxu0 0.0
        %516 = vmatpush.xpose.msra.mxu0 0.0
        %517 = vmatpush.xpose.msra.mxu0 0.0
        %518 = vmatpush.xpose.msra.mxu0 0.0
        %519 = vmatpush.xpose.msra.mxu0 0.0
        %520 = vmatpush.xpose.msra.mxu0 0.0
        %521 = vmatpush.xpose.msra.mxu0 0.0
        %522 = vmatpush.xpose.msra.mxu0 0.0
        %523 = vmatpush.xpose.msra.mxu0 0.0
        %524 = vmatpush.xpose.msra.mxu0 0.0
        %525 = vmatpush.xpose.msra.mxu0 0.0
        %526 = vmatpush.xpose.msra.mxu0 %v506
        %527 = vmatmul.f32.gmra.mxu0 %v506
        %v528 = vpop.f32.mrf.mxu0
        %v529 = vadd.f32 %v444, %v528
        %530 = vmatmul.f32.gmra.mxu0 %v509
        %v531 = vpop.f32.mrf.mxu0
        %v532 = vadd.f32 %v445, %v531
        %533 = vdwg.mxu0
        %v535 = vsel %vm446, %v409, 0
        %v538 = vsel %vm446, %v412, 0
        %540 = vmatpush.xpose.msra.mxu0 0.0
        %541 = vmatpush.xpose.msra.mxu0 0.0
        %542 = vmatpush.xpose.msra.mxu0 0.0
        %543 = vmatpush.xpose.msra.mxu0 0.0
        %544 = vmatpush.xpose.msra.mxu0 0.0
        %545 = vmatpush.xpose.msra.mxu0 0.0
        %546 = vmatpush.xpose.msra.mxu0 0.0
        %547 = vmatpush.xpose.msra.mxu0 0.0
        %548 = vmatpush.xpose.msra.mxu0 0.0
        %549 = vmatpush.xpose.msra.mxu0 0.0
        %550 = vmatpush.xpose.msra.mxu0 0.0
        %551 = vmatpush.xpose.msra.mxu0 0.0
        %552 = vmatpush.xpose.msra.mxu0 0.0
        %553 = vmatpush.xpose.msra.mxu0 0.0
        %554 = vmatpush.xpose.msra.mxu0 0.0
        %555 = vmatpush.xpose.msra.mxu0 %v535
        %556 = vmatmul.f32.gmra.mxu0 %v535
        %v557 = vpop.f32.mrf.mxu0
        %v558 = vadd.f32 %v444, %v557
        %559 = vmatmul.f32.gmra.mxu0 %v538
        %v560 = vpop.f32.mrf.mxu0
        %v561 = vadd.f32 %v445, %v560
        %562 = vdwg.mxu0
        %v563 = vperm.slane %v471, 0
        %v564 = vperm.slane %v500, 0
        %v565 = vperm.slane %v529, 0
        %v566 = vperm.slane %v558, 0
        %v567 = vrcp.pop %v563
        %v568 = vmul.f32 %v563, %v567
        %v569 = vsub.f32 1.0, %v568
        %v570 = vmul.f32 %v567, %v569
        %v571 = vadd.f32 %v567, %v570
        %vm572 = vweird.f32 %v563
        %vm573 = vweird.f32 %v567
        %vm574 = vmor %vm572, %vm573
        %v575 = vsel %vm574, %v567, %v571
        %v576 = vand.u32 2147483647, %v563
        %vm577 = vcmp.eq.f32.partialorder %v576, 8.507059e+37
        %v578 = vand.u32 %v563, 2147483648
        %v579 = vor.u32 1.1754944e-38, %v578
        %v580 = vsel %vm577, %v579, %v575
        %v581 = vmul.f32 %v471, %v580
        %v582 = vmul.f32 %v474, %v580
        %v583 = vrcp.pop %v564
        %v584 = vmul.f32 %v564, %v583
        %v585 = vsub.f32 1.0, %v584
        %v586 = vmul.f32 %v583, %v585
        %v587 = vadd.f32 %v583, %v586
        %vm588 = vweird.f32 %v564
        %vm589 = vweird.f32 %v583
        %vm590 = vmor %vm588, %vm589
        %v591 = vsel %vm590, %v583, %v587
        %v592 = vand.u32 2147483647, %v564
        %vm593 = vcmp.eq.f32.partialorder %v592, 8.507059e+37
        %v594 = vand.u32 %v564, 2147483648
        %v595 = vor.u32 1.1754944e-38, %v594
        %v596 = vsel %vm593, %v595, %v591
        %v597 = vmul.f32 %v500, %v596
        %v598 = vmul.f32 %v503, %v596
        %v599 = vrcp.pop %v565
        %v600 = vmul.f32 %v565, %v599
        %v601 = vsub.f32 1.0, %v600
        %v602 = vmul.f32 %v599, %v601
        %v603 = vadd.f32 %v599, %v602
        %vm604 = vweird.f32 %v565
        %vm605 = vweird.f32 %v599
        %vm606 = vmor %vm604, %vm605
        %v607 = vsel %vm606, %v599, %v603
        %v608 = vand.u32 2147483647, %v565
        %vm609 = vcmp.eq.f32.partialorder %v608, 8.507059e+37
        %v610 = vand.u32 %v565, 2147483648
        %v611 = vor.u32 1.1754944e-38, %v610
        %v612 = vsel %vm609, %v611, %v607
        %v613 = vmul.f32 %v529, %v612
        %v614 = vmul.f32 %v532, %v612
        %v615 = vrcp.pop %v566
        %v616 = vmul.f32 %v566, %v615
        %v617 = vsub.f32 1.0, %v616
        %v618 = vmul.f32 %v615, %v617
        %v619 = vadd.f32 %v615, %v618
        %vm620 = vweird.f32 %v566
        %vm621 = vweird.f32 %v615
        %vm622 = vmor %vm620, %vm621
        %v623 = vsel %vm622, %v615, %v619
        %v624 = vand.u32 2147483647, %v566
        %vm625 = vcmp.eq.f32.partialorder %v624, 8.507059e+37
        %v626 = vand.u32 %v566, 2147483648
        %v627 = vor.u32 1.1754944e-38, %v626
        %v628 = vsel %vm625, %v627, %v623
        %v629 = vmul.f32 %v558, %v628
        %v630 = vmul.f32 %v561, %v628
        %v631 = vsub.f32 %v471, %v441
        %v632 = vsub.f32 %v500, %v441
        %v633 = vsub.f32 %v529, %v441
        %v634 = vsub.f32 %v558, %v441
        %636 = vset.pattern.permute.xlu0 0
        %637 = vperm.xlu0 %636, %v581
        %v638 = vpop.permute.xlu0 %637
        %641 = vset.pattern.permute.xlu0 0
        %642 = vperm.xlu0 %641, %v582
        %v643 = vpop.permute.xlu0 %642
        %646 = vset.pattern.permute.xlu0 0
        %647 = vperm.xlu0 %646, %v597
        %v648 = vpop.permute.xlu0 %647
        %651 = vset.pattern.permute.xlu0 0
        %652 = vperm.xlu0 %651, %v598
        %v653 = vpop.permute.xlu0 %652
        %656 = vset.pattern.permute.xlu0 0
        %657 = vperm.xlu0 %656, %v613
        %v658 = vpop.permute.xlu0 %657
        %661 = vset.pattern.permute.xlu0 0
        %662 = vperm.xlu0 %661, %v614
        %v663 = vpop.permute.xlu0 %662
        %666 = vset.pattern.permute.xlu0 0
        %667 = vperm.xlu0 %666, %v629
        %v668 = vpop.permute.xlu0 %667
        %671 = vset.pattern.permute.xlu0 0
        %672 = vperm.xlu0 %671, %v630
        %v673 = vpop.permute.xlu0 %672
        %v675 = vperm.slane %v631, 0
        %v676 = vperm.slane %v632, 0
        %v677 = vperm.slane %v633, 0
        %v678 = vperm.slane %v634, 0
        %v679 = vmul.f32 %v638, %v675
        %v680 = vmul.f32 %v643, %v675
        %v681 = vmul.f32 %v648, %v676
        %v682 = vmul.f32 %v653, %v676
        %v683 = vmul.f32 %v658, %v677
        %v684 = vmul.f32 %v663, %v677
        %v685 = vmul.f32 %v668, %v678
        %v686 = vmul.f32 %v673, %v678
        %v687 = vsub.f32 %v471, %v679
        %v688 = vsub.f32 %v474, %v680
        %v689 = vsub.f32 %v500, %v681
        %v690 = vsub.f32 %v503, %v682
        %v691 = vsub.f32 %v529, %v683
        %v692 = vsub.f32 %v532, %v684
        %v693 = vsub.f32 %v558, %v685
        %v694 = vsub.f32 %v561, %v686
        %v695 = vperm.slane %v687, 1
        %v696 = vperm.slane %v689, 1
        %v697 = vperm.slane %v691, 1
        %v698 = vperm.slane %v693, 1
        %v699 = vrcp.pop %v695
        %v700 = vmul.f32 %v695, %v699
        %v701 = vsub.f32 1.0, %v700
        %v702 = vmul.f32 %v699, %v701
        %v703 = vadd.f32 %v699, %v702
        %vm704 = vweird.f32 %v695
        %vm705 = vweird.f32 %v699
        %vm706 = vmor %vm704, %vm705
        %v707 = vsel %vm706, %v699, %v703
        %v708 = vand.u32 2147483647, %v695
        %vm709 = vcmp.eq.f32.partialorder %v708, 8.507059e+37
        %v710 = vand.u32 %v695, 2147483648
        %v711 = vor.u32 1.1754944e-38, %v710
        %v712 = vsel %vm709, %v711, %v707
        %v713 = vmul.f32 %v687, %v712
        %v714 = vmul.f32 %v688, %v712
        %v715 = vrcp.pop %v696
        %v716 = vmul.f32 %v696, %v715
        %v717 = vsub.f32 1.0, %v716
        %v718 = vmul.f32 %v715, %v717
        %v719 = vadd.f32 %v715, %v718
        %vm720 = vweird.f32 %v696
        %vm721 = vweird.f32 %v715
        %vm722 = vmor %vm720, %vm721
        %v723 = vsel %vm722, %v715, %v719
        %v724 = vand.u32 2147483647, %v696
        %vm725 = vcmp.eq.f32.partialorder %v724, 8.507059e+37
        %v726 = vand.u32 %v696, 2147483648
        %v727 = vor.u32 1.1754944e-38, %v726
        %v728 = vsel %vm725, %v727, %v723
        %v729 = vmul.f32 %v689, %v728
        %v730 = vmul.f32 %v690, %v728
        %v731 = vrcp.pop %v697
        %v732 = vmul.f32 %v697, %v731
        %v733 = vsub.f32 1.0, %v732
        %v734 = vmul.f32 %v731, %v733
        %v735 = vadd.f32 %v731, %v734
        %vm736 = vweird.f32 %v697
        %vm737 = vweird.f32 %v731
        %vm738 = vmor %vm736, %vm737
        %v739 = vsel %vm738, %v731, %v735
        %v740 = vand.u32 2147483647, %v697
        %vm741 = vcmp.eq.f32.partialorder %v740, 8.507059e+37
        %v742 = vand.u32 %v697, 2147483648
        %v743 = vor.u32 1.1754944e-38, %v742
        %v744 = vsel %vm741, %v743, %v739
        %v745 = vmul.f32 %v691, %v744
        %v746 = vmul.f32 %v692, %v744
        %v747 = vrcp.pop %v698
        %v748 = vmul.f32 %v698, %v747
        %v749 = vsub.f32 1.0, %v748
        %v750 = vmul.f32 %v747, %v749
        %v751 = vadd.f32 %v747, %v750
        %vm752 = vweird.f32 %v698
        %vm753 = vweird.f32 %v747
        %vm754 = vmor %vm752, %vm753
        %v755 = vsel %vm754, %v747, %v751
        %v756 = vand.u32 2147483647, %v698
        %vm757 = vcmp.eq.f32.partialorder %v756, 8.507059e+37
        %v758 = vand.u32 %v698, 2147483648
        %v759 = vor.u32 1.1754944e-38, %v758
        %v760 = vsel %vm757, %v759, %v755
        %v761 = vmul.f32 %v693, %v760
        %v762 = vmul.f32 %v694, %v760
        %v763 = vsub.f32 %v687, %v441
        %v764 = vsub.f32 %v689, %v441
        %v765 = vsub.f32 %v691, %v441
        %v766 = vsub.f32 %v693, %v441
        %768 = vset.pattern.permute.xlu0 1
        %769 = vperm.xlu0 %768, %v713
        %v770 = vpop.permute.xlu0 %769
        %773 = vset.pattern.permute.xlu0 1
        %774 = vperm.xlu0 %773, %v714
        %v775 = vpop.permute.xlu0 %774
        %778 = vset.pattern.permute.xlu0 1
        %779 = vperm.xlu0 %778, %v729
        %v780 = vpop.permute.xlu0 %779
        %783 = vset.pattern.permute.xlu0 1
        %784 = vperm.xlu0 %783, %v730
        %v785 = vpop.permute.xlu0 %784
        %788 = vset.pattern.permute.xlu0 1
        %789 = vperm.xlu0 %788, %v745
        %v790 = vpop.permute.xlu0 %789
        %793 = vset.pattern.permute.xlu0 1
        %794 = vperm.xlu0 %793, %v746
        %v795 = vpop.permute.xlu0 %794
        %798 = vset.pattern.permute.xlu0 1
        %799 = vperm.xlu0 %798, %v761
        %v800 = vpop.permute.xlu0 %799
        %803 = vset.pattern.permute.xlu0 1
        %804 = vperm.xlu0 %803, %v762
        %v805 = vpop.permute.xlu0 %804
        %v807 = vperm.slane %v763, 1
        %v808 = vperm.slane %v764, 1
        %v809 = vperm.slane %v765, 1
        %v810 = vperm.slane %v766, 1
        %v811 = vmul.f32 %v770, %v807
        %v812 = vmul.f32 %v775, %v807
        %v813 = vmul.f32 %v780, %v808
        %v814 = vmul.f32 %v785, %v808
        %v815 = vmul.f32 %v790, %v809
        %v816 = vmul.f32 %v795, %v809
        %v817 = vmul.f32 %v800, %v810
        %v818 = vmul.f32 %v805, %v810
        %v819 = vsub.f32 %v687, %v811
        %v820 = vsub.f32 %v688, %v812
        %v821 = vsub.f32 %v689, %v813
        %v822 = vsub.f32 %v690, %v814
        %v823 = vsub.f32 %v691, %v815
        %v824 = vsub.f32 %v692, %v816
        %v825 = vsub.f32 %v693, %v817
        %v826 = vsub.f32 %v694, %v818
        %v827 = vperm.slane %v819, 2
        %v828 = vperm.slane %v821, 2
        %v829 = vperm.slane %v823, 2
        %v830 = vperm.slane %v825, 2
        %v831 = vrcp.pop %v827
        %v832 = vmul.f32 %v827, %v831
        %v833 = vsub.f32 1.0, %v832
        %v834 = vmul.f32 %v831, %v833
        %v835 = vadd.f32 %v831, %v834
        %vm836 = vweird.f32 %v827
        %vm837 = vweird.f32 %v831
        %vm838 = vmor %vm836, %vm837
        %v839 = vsel %vm838, %v831, %v835
        %v840 = vand.u32 2147483647, %v827
        %vm841 = vcmp.eq.f32.partialorder %v840, 8.507059e+37
        %v842 = vand.u32 %v827, 2147483648
        %v843 = vor.u32 1.1754944e-38, %v842
        %v844 = vsel %vm841, %v843, %v839
        %v845 = vmul.f32 %v819, %v844
        %v846 = vmul.f32 %v820, %v844
        %v847 = vrcp.pop %v828
        %v848 = vmul.f32 %v828, %v847
        %v849 = vsub.f32 1.0, %v848
        %v850 = vmul.f32 %v847, %v849
        %v851 = vadd.f32 %v847, %v850
        %vm852 = vweird.f32 %v828
        %vm853 = vweird.f32 %v847
        %vm854 = vmor %vm852, %vm853
        %v855 = vsel %vm854, %v847, %v851
        %v856 = vand.u32 2147483647, %v828
        %vm857 = vcmp.eq.f32.partialorder %v856, 8.507059e+37
        %v858 = vand.u32 %v828, 2147483648
        %v859 = vor.u32 1.1754944e-38, %v858
        %v860 = vsel %vm857, %v859, %v855
        %v861 = vmul.f32 %v821, %v860
        %v862 = vmul.f32 %v822, %v860
        %v863 = vrcp.pop %v829
        %v864 = vmul.f32 %v829, %v863
        %v865 = vsub.f32 1.0, %v864
        %v866 = vmul.f32 %v863, %v865
        %v867 = vadd.f32 %v863, %v866
        %vm868 = vweird.f32 %v829
        %vm869 = vweird.f32 %v863
        %vm870 = vmor %vm868, %vm869
        %v871 = vsel %vm870, %v863, %v867
        %v872 = vand.u32 2147483647, %v829
        %vm873 = vcmp.eq.f32.partialorder %v872, 8.507059e+37
        %v874 = vand.u32 %v829, 2147483648
        %v875 = vor.u32 1.1754944e-38, %v874
        %v876 = vsel %vm873, %v875, %v871
        %v877 = vmul.f32 %v823, %v876
        %v878 = vmul.f32 %v824, %v876
        %v879 = vrcp.pop %v830
        %v880 = vmul.f32 %v830, %v879
        %v881 = vsub.f32 1.0, %v880
        %v882 = vmul.f32 %v879, %v881
        %v883 = vadd.f32 %v879, %v882
        %vm884 = vweird.f32 %v830
        %vm885 = vweird.f32 %v879
        %vm886 = vmor %vm884, %vm885
        %v887 = vsel %vm886, %v879, %v883
        %v888 = vand.u32 2147483647, %v830
        %vm889 = vcmp.eq.f32.partialorder %v888, 8.507059e+37
        %v890 = vand.u32 %v830, 2147483648
        %v891 = vor.u32 1.1754944e-38, %v890
        %v892 = vsel %vm889, %v891, %v887
        %v893 = vmul.f32 %v825, %v892
        %v894 = vmul.f32 %v826, %v892
        %v895 = vsub.f32 %v819, %v441
        %v896 = vsub.f32 %v821, %v441
        %v897 = vsub.f32 %v823, %v441
        %v898 = vsub.f32 %v825, %v441
        %900 = vset.pattern.permute.xlu0 2
        %901 = vperm.xlu0 %900, %v845
        %v902 = vpop.permute.xlu0 %901
        %905 = vset.pattern.permute.xlu0 2
        %906 = vperm.xlu0 %905, %v846
        %v907 = vpop.permute.xlu0 %906
        %910 = vset.pattern.permute.xlu0 2
        %911 = vperm.xlu0 %910, %v861
        %v912 = vpop.permute.xlu0 %911
        %915 = vset.pattern.permute.xlu0 2
        %916 = vperm.xlu0 %915, %v862
        %v917 = vpop.permute.xlu0 %916
        %920 = vset.pattern.permute.xlu0 2
        %921 = vperm.xlu0 %920, %v877
        %v922 = vpop.permute.xlu0 %921
        %925 = vset.pattern.permute.xlu0 2
        %926 = vperm.xlu0 %925, %v878
        %v927 = vpop.permute.xlu0 %926
        %930 = vset.pattern.permute.xlu0 2
        %931 = vperm.xlu0 %930, %v893
        %v932 = vpop.permute.xlu0 %931
        %935 = vset.pattern.permute.xlu0 2
        %936 = vperm.xlu0 %935, %v894
        %v937 = vpop.permute.xlu0 %936
        %v939 = vperm.slane %v895, 2
        %v940 = vperm.slane %v896, 2
        %v941 = vperm.slane %v897, 2
        %v942 = vperm.slane %v898, 2
        %v943 = vmul.f32 %v902, %v939
        %v944 = vmul.f32 %v907, %v939
        %v945 = vmul.f32 %v912, %v940
        %v946 = vmul.f32 %v917, %v940
        %v947 = vmul.f32 %v922, %v941
        %v948 = vmul.f32 %v927, %v941
        %v949 = vmul.f32 %v932, %v942
        %v950 = vmul.f32 %v937, %v942
        %v951 = vsub.f32 %v819, %v943
        %v952 = vsub.f32 %v820, %v944
        %v953 = vsub.f32 %v821, %v945
        %v954 = vsub.f32 %v822, %v946
        %v955 = vsub.f32 %v823, %v947
        %v956 = vsub.f32 %v824, %v948
        %v957 = vsub.f32 %v825, %v949
        %v958 = vsub.f32 %v826, %v950
        %v959 = vperm.slane %v951, 3
        %v960 = vperm.slane %v953, 3
        %v961 = vperm.slane %v955, 3
        %v962 = vperm.slane %v957, 3
        %v963 = vrcp.pop %v959
        %v964 = vmul.f32 %v959, %v963
        %v965 = vsub.f32 1.0, %v964
        %v966 = vmul.f32 %v963, %v965
        %v967 = vadd.f32 %v963, %v966
        %vm968 = vweird.f32 %v959
        %vm969 = vweird.f32 %v963
        %vm970 = vmor %vm968, %vm969
        %v971 = vsel %vm970, %v963, %v967
        %v972 = vand.u32 2147483647, %v959
        %vm973 = vcmp.eq.f32.partialorder %v972, 8.507059e+37
        %v974 = vand.u32 %v959, 2147483648
        %v975 = vor.u32 1.1754944e-38, %v974
        %v976 = vsel %vm973, %v975, %v971
        %v977 = vmul.f32 %v951, %v976
        %v978 = vmul.f32 %v952, %v976
        %v979 = vrcp.pop %v960
        %v980 = vmul.f32 %v960, %v979
        %v981 = vsub.f32 1.0, %v980
        %v982 = vmul.f32 %v979, %v981
        %v983 = vadd.f32 %v979, %v982
        %vm984 = vweird.f32 %v960
        %vm985 = vweird.f32 %v979
        %vm986 = vmor %vm984, %vm985
        %v987 = vsel %vm986, %v979, %v983
        %v988 = vand.u32 2147483647, %v960
        %vm989 = vcmp.eq.f32.partialorder %v988, 8.507059e+37
        %v990 = vand.u32 %v960, 2147483648
        %v991 = vor.u32 1.1754944e-38, %v990
        %v992 = vsel %vm989, %v991, %v987
        %v993 = vmul.f32 %v953, %v992
        %v994 = vmul.f32 %v954, %v992
        %v995 = vrcp.pop %v961
        %v996 = vmul.f32 %v961, %v995
        %v997 = vsub.f32 1.0, %v996
        %v998 = vmul.f32 %v995, %v997
        %v999 = vadd.f32 %v995, %v998
        %vm1000 = vweird.f32 %v961
        %vm1001 = vweird.f32 %v995
        %vm1002 = vmor %vm1000, %vm1001
        %v1003 = vsel %vm1002, %v995, %v999
        %v1004 = vand.u32 2147483647, %v961
        %vm1005 = vcmp.eq.f32.partialorder %v1004, 8.507059e+37
        %v1006 = vand.u32 %v961, 2147483648
        %v1007 = vor.u32 1.1754944e-38, %v1006
        %v1008 = vsel %vm1005, %v1007, %v1003
        %v1009 = vmul.f32 %v955, %v1008
        %v1010 = vmul.f32 %v956, %v1008
        %v1011 = vrcp.pop %v962
        %v1012 = vmul.f32 %v962, %v1011
        %v1013 = vsub.f32 1.0, %v1012
        %v1014 = vmul.f32 %v1011, %v1013
        %v1015 = vadd.f32 %v1011, %v1014
        %vm1016 = vweird.f32 %v962
        %vm1017 = vweird.f32 %v1011
        %vm1018 = vmor %vm1016, %vm1017
        %v1019 = vsel %vm1018, %v1011, %v1015
        %v1020 = vand.u32 2147483647, %v962
        %vm1021 = vcmp.eq.f32.partialorder %v1020, 8.507059e+37
        %v1022 = vand.u32 %v962, 2147483648
        %v1023 = vor.u32 1.1754944e-38, %v1022
        %v1024 = vsel %vm1021, %v1023, %v1019
        %v1025 = vmul.f32 %v957, %v1024
        %v1026 = vmul.f32 %v958, %v1024
        %v1027 = vsub.f32 %v951, %v441
        %v1028 = vsub.f32 %v953, %v441
        %v1029 = vsub.f32 %v955, %v441
        %v1030 = vsub.f32 %v957, %v441
        %1032 = vset.pattern.permute.xlu0 3
        %1033 = vperm.xlu0 %1032, %v977
        %v1034 = vpop.permute.xlu0 %1033
        %1037 = vset.pattern.permute.xlu0 3
        %1038 = vperm.xlu0 %1037, %v978
        %v1039 = vpop.permute.xlu0 %1038
        %1042 = vset.pattern.permute.xlu0 3
        %1043 = vperm.xlu0 %1042, %v993
        %v1044 = vpop.permute.xlu0 %1043
        %1047 = vset.pattern.permute.xlu0 3
        %1048 = vperm.xlu0 %1047, %v994
        %v1049 = vpop.permute.xlu0 %1048
        %1052 = vset.pattern.permute.xlu0 3
        %1053 = vperm.xlu0 %1052, %v1009
        %v1054 = vpop.permute.xlu0 %1053
        %1057 = vset.pattern.permute.xlu0 3
        %1058 = vperm.xlu0 %1057, %v1010
        %v1059 = vpop.permute.xlu0 %1058
        %1062 = vset.pattern.permute.xlu0 3
        %1063 = vperm.xlu0 %1062, %v1025
        %v1064 = vpop.permute.xlu0 %1063
        %1067 = vset.pattern.permute.xlu0 3
        %1068 = vperm.xlu0 %1067, %v1026
        %v1069 = vpop.permute.xlu0 %1068
        %v1071 = vperm.slane %v1027, 3
        %v1072 = vperm.slane %v1028, 3
        %v1073 = vperm.slane %v1029, 3
        %v1074 = vperm.slane %v1030, 3
        %v1075 = vmul.f32 %v1034, %v1071
        %v1076 = vmul.f32 %v1039, %v1071
        %v1077 = vmul.f32 %v1044, %v1072
        %v1078 = vmul.f32 %v1049, %v1072
        %v1079 = vmul.f32 %v1054, %v1073
        %v1080 = vmul.f32 %v1059, %v1073
        %v1081 = vmul.f32 %v1064, %v1074
        %v1082 = vmul.f32 %v1069, %v1074
        %v1083 = vsub.f32 %v951, %v1075
        %v1084 = vsub.f32 %v952, %v1076
        %v1085 = vsub.f32 %v953, %v1077
        %v1086 = vsub.f32 %v954, %v1078
        %v1087 = vsub.f32 %v955, %v1079
        %v1088 = vsub.f32 %v956, %v1080
        %v1089 = vsub.f32 %v957, %v1081
        %v1090 = vsub.f32 %v958, %v1082
        %v1091 = vperm.slane %v1083, 4
        %v1092 = vperm.slane %v1085, 4
        %v1093 = vperm.slane %v1087, 4
        %v1094 = vperm.slane %v1089, 4
        %v1095 = vrcp.pop %v1091
        %v1096 = vmul.f32 %v1091, %v1095
        %v1097 = vsub.f32 1.0, %v1096
        %v1098 = vmul.f32 %v1095, %v1097
        %v1099 = vadd.f32 %v1095, %v1098
        %vm1100 = vweird.f32 %v1091
        %vm1101 = vweird.f32 %v1095
        %vm1102 = vmor %vm1100, %vm1101
        %v1103 = vsel %vm1102, %v1095, %v1099
        %v1104 = vand.u32 2147483647, %v1091
        %vm1105 = vcmp.eq.f32.partialorder %v1104, 8.507059e+37
        %v1106 = vand.u32 %v1091, 2147483648
        %v1107 = vor.u32 1.1754944e-38, %v1106
        %v1108 = vsel %vm1105, %v1107, %v1103
        %v1109 = vmul.f32 %v1083, %v1108
        %v1110 = vmul.f32 %v1084, %v1108
        %v1111 = vrcp.pop %v1092
        %v1112 = vmul.f32 %v1092, %v1111
        %v1113 = vsub.f32 1.0, %v1112
        %v1114 = vmul.f32 %v1111, %v1113
        %v1115 = vadd.f32 %v1111, %v1114
        %vm1116 = vweird.f32 %v1092
        %vm1117 = vweird.f32 %v1111
        %vm1118 = vmor %vm1116, %vm1117
        %v1119 = vsel %vm1118, %v1111, %v1115
        %v1120 = vand.u32 2147483647, %v1092
        %vm1121 = vcmp.eq.f32.partialorder %v1120, 8.507059e+37
        %v1122 = vand.u32 %v1092, 2147483648
        %v1123 = vor.u32 1.1754944e-38, %v1122
        %v1124 = vsel %vm1121, %v1123, %v1119
        %v1125 = vmul.f32 %v1085, %v1124
        %v1126 = vmul.f32 %v1086, %v1124
        %v1127 = vrcp.pop %v1093
        %v1128 = vmul.f32 %v1093, %v1127
        %v1129 = vsub.f32 1.0, %v1128
        %v1130 = vmul.f32 %v1127, %v1129
        %v1131 = vadd.f32 %v1127, %v1130
        %vm1132 = vweird.f32 %v1093
        %vm1133 = vweird.f32 %v1127
        %vm1134 = vmor %vm1132, %vm1133
        %v1135 = vsel %vm1134, %v1127, %v1131
        %v1136 = vand.u32 2147483647, %v1093
        %vm1137 = vcmp.eq.f32.partialorder %v1136, 8.507059e+37
        %v1138 = vand.u32 %v1093, 2147483648
        %v1139 = vor.u32 1.1754944e-38, %v1138
        %v1140 = vsel %vm1137, %v1139, %v1135
        %v1141 = vmul.f32 %v1087, %v1140
        %v1142 = vmul.f32 %v1088, %v1140
        %v1143 = vrcp.pop %v1094
        %v1144 = vmul.f32 %v1094, %v1143
        %v1145 = vsub.f32 1.0, %v1144
        %v1146 = vmul.f32 %v1143, %v1145
        %v1147 = vadd.f32 %v1143, %v1146
        %vm1148 = vweird.f32 %v1094
        %vm1149 = vweird.f32 %v1143
        %vm1150 = vmor %vm1148, %vm1149
        %v1151 = vsel %vm1150, %v1143, %v1147
        %v1152 = vand.u32 2147483647, %v1094
        %vm1153 = vcmp.eq.f32.partialorder %v1152, 8.507059e+37
        %v1154 = vand.u32 %v1094, 2147483648
        %v1155 = vor.u32 1.1754944e-38, %v1154
        %v1156 = vsel %vm1153, %v1155, %v1151
        %v1157 = vmul.f32 %v1089, %v1156
        %v1158 = vmul.f32 %v1090, %v1156
        %v1159 = vsub.f32 %v1083, %v441
        %v1160 = vsub.f32 %v1085, %v441
        %v1161 = vsub.f32 %v1087, %v441
        %v1162 = vsub.f32 %v1089, %v441
        %1164 = vset.pattern.permute.xlu0 4
        %1165 = vperm.xlu0 %1164, %v1109
        %v1166 = vpop.permute.xlu0 %1165
        %1169 = vset.pattern.permute.xlu0 4
        %1170 = vperm.xlu0 %1169, %v1110
        %v1171 = vpop.permute.xlu0 %1170
        %1174 = vset.pattern.permute.xlu0 4
        %1175 = vperm.xlu0 %1174, %v1125
        %v1176 = vpop.permute.xlu0 %1175
        %1179 = vset.pattern.permute.xlu0 4
        %1180 = vperm.xlu0 %1179, %v1126
        %v1181 = vpop.permute.xlu0 %1180
        %1184 = vset.pattern.permute.xlu0 4
        %1185 = vperm.xlu0 %1184, %v1141
        %v1186 = vpop.permute.xlu0 %1185
        %1189 = vset.pattern.permute.xlu0 4
        %1190 = vperm.xlu0 %1189, %v1142
        %v1191 = vpop.permute.xlu0 %1190
        %1194 = vset.pattern.permute.xlu0 4
        %1195 = vperm.xlu0 %1194, %v1157
        %v1196 = vpop.permute.xlu0 %1195
        %1199 = vset.pattern.permute.xlu0 4
        %1200 = vperm.xlu0 %1199, %v1158
        %v1201 = vpop.permute.xlu0 %1200
        %v1203 = vperm.slane %v1159, 4
        %v1204 = vperm.slane %v1160, 4
        %v1205 = vperm.slane %v1161, 4
        %v1206 = vperm.slane %v1162, 4
        %v1207 = vmul.f32 %v1166, %v1203
        %v1208 = vmul.f32 %v1171, %v1203
        %v1209 = vmul.f32 %v1176, %v1204
        %v1210 = vmul.f32 %v1181, %v1204
        %v1211 = vmul.f32 %v1186, %v1205
        %v1212 = vmul.f32 %v1191, %v1205
        %v1213 = vmul.f32 %v1196, %v1206
        %v1214 = vmul.f32 %v1201, %v1206
        %v1215 = vsub.f32 %v1083, %v1207
        %v1216 = vsub.f32 %v1084, %v1208
        %v1217 = vsub.f32 %v1085, %v1209
        %v1218 = vsub.f32 %v1086, %v1210
        %v1219 = vsub.f32 %v1087, %v1211
        %v1220 = vsub.f32 %v1088, %v1212
        %v1221 = vsub.f32 %v1089, %v1213
        %v1222 = vsub.f32 %v1090, %v1214
        %v1223 = vperm.slane %v1215, 5
        %v1224 = vperm.slane %v1217, 5
        %v1225 = vperm.slane %v1219, 5
        %v1226 = vperm.slane %v1221, 5
        %v1227 = vrcp.pop %v1223
        %v1228 = vmul.f32 %v1223, %v1227
        %v1229 = vsub.f32 1.0, %v1228
        %v1230 = vmul.f32 %v1227, %v1229
        %v1231 = vadd.f32 %v1227, %v1230
        %vm1232 = vweird.f32 %v1223
        %vm1233 = vweird.f32 %v1227
        %vm1234 = vmor %vm1232, %vm1233
        %v1235 = vsel %vm1234, %v1227, %v1231
        %v1236 = vand.u32 2147483647, %v1223
        %vm1237 = vcmp.eq.f32.partialorder %v1236, 8.507059e+37
        %v1238 = vand.u32 %v1223, 2147483648
        %v1239 = vor.u32 1.1754944e-38, %v1238
        %v1240 = vsel %vm1237, %v1239, %v1235
        %v1241 = vmul.f32 %v1215, %v1240
        %v1242 = vmul.f32 %v1216, %v1240
        %v1243 = vrcp.pop %v1224
        %v1244 = vmul.f32 %v1224, %v1243
        %v1245 = vsub.f32 1.0, %v1244
        %v1246 = vmul.f32 %v1243, %v1245
        %v1247 = vadd.f32 %v1243, %v1246
        %vm1248 = vweird.f32 %v1224
        %vm1249 = vweird.f32 %v1243
        %vm1250 = vmor %vm1248, %vm1249
        %v1251 = vsel %vm1250, %v1243, %v1247
        %v1252 = vand.u32 2147483647, %v1224
        %vm1253 = vcmp.eq.f32.partialorder %v1252, 8.507059e+37
        %v1254 = vand.u32 %v1224, 2147483648
        %v1255 = vor.u32 1.1754944e-38, %v1254
        %v1256 = vsel %vm1253, %v1255, %v1251
        %v1257 = vmul.f32 %v1217, %v1256
        %v1258 = vmul.f32 %v1218, %v1256
        %v1259 = vrcp.pop %v1225
        %v1260 = vmul.f32 %v1225, %v1259
        %v1261 = vsub.f32 1.0, %v1260
        %v1262 = vmul.f32 %v1259, %v1261
        %v1263 = vadd.f32 %v1259, %v1262
        %vm1264 = vweird.f32 %v1225
        %vm1265 = vweird.f32 %v1259
        %vm1266 = vmor %vm1264, %vm1265
        %v1267 = vsel %vm1266, %v1259, %v1263
        %v1268 = vand.u32 2147483647, %v1225
        %vm1269 = vcmp.eq.f32.partialorder %v1268, 8.507059e+37
        %v1270 = vand.u32 %v1225, 2147483648
        %v1271 = vor.u32 1.1754944e-38, %v1270
        %v1272 = vsel %vm1269, %v1271, %v1267
        %v1273 = vmul.f32 %v1219, %v1272
        %v1274 = vmul.f32 %v1220, %v1272
        %v1275 = vrcp.pop %v1226
        %v1276 = vmul.f32 %v1226, %v1275
        %v1277 = vsub.f32 1.0, %v1276
        %v1278 = vmul.f32 %v1275, %v1277
        %v1279 = vadd.f32 %v1275, %v1278
        %vm1280 = vweird.f32 %v1226
        %vm1281 = vweird.f32 %v1275
        %vm1282 = vmor %vm1280, %vm1281
        %v1283 = vsel %vm1282, %v1275, %v1279
        %v1284 = vand.u32 2147483647, %v1226
        %vm1285 = vcmp.eq.f32.partialorder %v1284, 8.507059e+37
        %v1286 = vand.u32 %v1226, 2147483648
        %v1287 = vor.u32 1.1754944e-38, %v1286
        %v1288 = vsel %vm1285, %v1287, %v1283
        %v1289 = vmul.f32 %v1221, %v1288
        %v1290 = vmul.f32 %v1222, %v1288
        %v1291 = vsub.f32 %v1215, %v441
        %v1292 = vsub.f32 %v1217, %v441
        %v1293 = vsub.f32 %v1219, %v441
        %v1294 = vsub.f32 %v1221, %v441
        %1296 = vset.pattern.permute.xlu0 5
        %1297 = vperm.xlu0 %1296, %v1241
        %v1298 = vpop.permute.xlu0 %1297
        %1301 = vset.pattern.permute.xlu0 5
        %1302 = vperm.xlu0 %1301, %v1242
        %v1303 = vpop.permute.xlu0 %1302
        %1306 = vset.pattern.permute.xlu0 5
        %1307 = vperm.xlu0 %1306, %v1257
        %v1308 = vpop.permute.xlu0 %1307
        %1311 = vset.pattern.permute.xlu0 5
        %1312 = vperm.xlu0 %1311, %v1258
        %v1313 = vpop.permute.xlu0 %1312
        %1316 = vset.pattern.permute.xlu0 5
        %1317 = vperm.xlu0 %1316, %v1273
        %v1318 = vpop.permute.xlu0 %1317
        %1321 = vset.pattern.permute.xlu0 5
        %1322 = vperm.xlu0 %1321, %v1274
        %v1323 = vpop.permute.xlu0 %1322
        %1326 = vset.pattern.permute.xlu0 5
        %1327 = vperm.xlu0 %1326, %v1289
        %v1328 = vpop.permute.xlu0 %1327
        %1331 = vset.pattern.permute.xlu0 5
        %1332 = vperm.xlu0 %1331, %v1290
        %v1333 = vpop.permute.xlu0 %1332
        %v1335 = vperm.slane %v1291, 5
        %v1336 = vperm.slane %v1292, 5
        %v1337 = vperm.slane %v1293, 5
        %v1338 = vperm.slane %v1294, 5
        %v1339 = vmul.f32 %v1298, %v1335
        %v1340 = vmul.f32 %v1303, %v1335
        %v1341 = vmul.f32 %v1308, %v1336
        %v1342 = vmul.f32 %v1313, %v1336
        %v1343 = vmul.f32 %v1318, %v1337
        %v1344 = vmul.f32 %v1323, %v1337
        %v1345 = vmul.f32 %v1328, %v1338
        %v1346 = vmul.f32 %v1333, %v1338
        %v1347 = vsub.f32 %v1215, %v1339
        %v1348 = vsub.f32 %v1216, %v1340
        %v1349 = vsub.f32 %v1217, %v1341
        %v1350 = vsub.f32 %v1218, %v1342
        %v1351 = vsub.f32 %v1219, %v1343
        %v1352 = vsub.f32 %v1220, %v1344
        %v1353 = vsub.f32 %v1221, %v1345
        %v1354 = vsub.f32 %v1222, %v1346
        %v1355 = vperm.slane %v1347, 6
        %v1356 = vperm.slane %v1349, 6
        %v1357 = vperm.slane %v1351, 6
        %v1358 = vperm.slane %v1353, 6
        %v1359 = vrcp.pop %v1355
        %v1360 = vmul.f32 %v1355, %v1359
        %v1361 = vsub.f32 1.0, %v1360
        %v1362 = vmul.f32 %v1359, %v1361
        %v1363 = vadd.f32 %v1359, %v1362
        %vm1364 = vweird.f32 %v1355
        %vm1365 = vweird.f32 %v1359
        %vm1366 = vmor %vm1364, %vm1365
        %v1367 = vsel %vm1366, %v1359, %v1363
        %v1368 = vand.u32 2147483647, %v1355
        %vm1369 = vcmp.eq.f32.partialorder %v1368, 8.507059e+37
        %v1370 = vand.u32 %v1355, 2147483648
        %v1371 = vor.u32 1.1754944e-38, %v1370
        %v1372 = vsel %vm1369, %v1371, %v1367
        %v1373 = vmul.f32 %v1347, %v1372
        %v1374 = vmul.f32 %v1348, %v1372
        %v1375 = vrcp.pop %v1356
        %v1376 = vmul.f32 %v1356, %v1375
        %v1377 = vsub.f32 1.0, %v1376
        %v1378 = vmul.f32 %v1375, %v1377
        %v1379 = vadd.f32 %v1375, %v1378
        %vm1380 = vweird.f32 %v1356
        %vm1381 = vweird.f32 %v1375
        %vm1382 = vmor %vm1380, %vm1381
        %v1383 = vsel %vm1382, %v1375, %v1379
        %v1384 = vand.u32 2147483647, %v1356
        %vm1385 = vcmp.eq.f32.partialorder %v1384, 8.507059e+37
        %v1386 = vand.u32 %v1356, 2147483648
        %v1387 = vor.u32 1.1754944e-38, %v1386
        %v1388 = vsel %vm1385, %v1387, %v1383
        %v1389 = vmul.f32 %v1349, %v1388
        %v1390 = vmul.f32 %v1350, %v1388
        %v1391 = vrcp.pop %v1357
        %v1392 = vmul.f32 %v1357, %v1391
        %v1393 = vsub.f32 1.0, %v1392
        %v1394 = vmul.f32 %v1391, %v1393
        %v1395 = vadd.f32 %v1391, %v1394
        %vm1396 = vweird.f32 %v1357
        %vm1397 = vweird.f32 %v1391
        %vm1398 = vmor %vm1396, %vm1397
        %v1399 = vsel %vm1398, %v1391, %v1395
        %v1400 = vand.u32 2147483647, %v1357
        %vm1401 = vcmp.eq.f32.partialorder %v1400, 8.507059e+37
        %v1402 = vand.u32 %v1357, 2147483648
        %v1403 = vor.u32 1.1754944e-38, %v1402
        %v1404 = vsel %vm1401, %v1403, %v1399
        %v1405 = vmul.f32 %v1351, %v1404
        %v1406 = vmul.f32 %v1352, %v1404
        %v1407 = vrcp.pop %v1358
        %v1408 = vmul.f32 %v1358, %v1407
        %v1409 = vsub.f32 1.0, %v1408
        %v1410 = vmul.f32 %v1407, %v1409
        %v1411 = vadd.f32 %v1407, %v1410
        %vm1412 = vweird.f32 %v1358
        %vm1413 = vweird.f32 %v1407
        %vm1414 = vmor %vm1412, %vm1413
        %v1415 = vsel %vm1414, %v1407, %v1411
        %v1416 = vand.u32 2147483647, %v1358
        %vm1417 = vcmp.eq.f32.partialorder %v1416, 8.507059e+37
        %v1418 = vand.u32 %v1358, 2147483648
        %v1419 = vor.u32 1.1754944e-38, %v1418
        %v1420 = vsel %vm1417, %v1419, %v1415
        %v1421 = vmul.f32 %v1353, %v1420
        %v1422 = vmul.f32 %v1354, %v1420
        %v1423 = vsub.f32 %v1347, %v441
        %v1424 = vsub.f32 %v1349, %v441
        %v1425 = vsub.f32 %v1351, %v441
        %v1426 = vsub.f32 %v1353, %v441
        %1428 = vset.pattern.permute.xlu0 6
        %1429 = vperm.xlu0 %1428, %v1373
        %v1430 = vpop.permute.xlu0 %1429
        %1433 = vset.pattern.permute.xlu0 6
        %1434 = vperm.xlu0 %1433, %v1374
        %v1435 = vpop.permute.xlu0 %1434
        %1438 = vset.pattern.permute.xlu0 6
        %1439 = vperm.xlu0 %1438, %v1389
        %v1440 = vpop.permute.xlu0 %1439
        %1443 = vset.pattern.permute.xlu0 6
        %1444 = vperm.xlu0 %1443, %v1390
        %v1445 = vpop.permute.xlu0 %1444
        %1448 = vset.pattern.permute.xlu0 6
        %1449 = vperm.xlu0 %1448, %v1405
        %v1450 = vpop.permute.xlu0 %1449
        %1453 = vset.pattern.permute.xlu0 6
        %1454 = vperm.xlu0 %1453, %v1406
        %v1455 = vpop.permute.xlu0 %1454
        %1458 = vset.pattern.permute.xlu0 6
        %1459 = vperm.xlu0 %1458, %v1421
        %v1460 = vpop.permute.xlu0 %1459
        %1463 = vset.pattern.permute.xlu0 6
        %1464 = vperm.xlu0 %1463, %v1422
        %v1465 = vpop.permute.xlu0 %1464
        %v1467 = vperm.slane %v1423, 6
        %v1468 = vperm.slane %v1424, 6
        %v1469 = vperm.slane %v1425, 6
        %v1470 = vperm.slane %v1426, 6
        %v1471 = vmul.f32 %v1430, %v1467
        %v1472 = vmul.f32 %v1435, %v1467
        %v1473 = vmul.f32 %v1440, %v1468
        %v1474 = vmul.f32 %v1445, %v1468
        %v1475 = vmul.f32 %v1450, %v1469
        %v1476 = vmul.f32 %v1455, %v1469
        %v1477 = vmul.f32 %v1460, %v1470
        %v1478 = vmul.f32 %v1465, %v1470
        %v1479 = vsub.f32 %v1347, %v1471
        %v1480 = vsub.f32 %v1348, %v1472
        %v1481 = vsub.f32 %v1349, %v1473
        %v1482 = vsub.f32 %v1350, %v1474
        %v1483 = vsub.f32 %v1351, %v1475
        %v1484 = vsub.f32 %v1352, %v1476
        %v1485 = vsub.f32 %v1353, %v1477
        %v1486 = vsub.f32 %v1354, %v1478
        %v1487 = vperm.slane %v1479, 7
        %v1488 = vperm.slane %v1481, 7
        %v1489 = vperm.slane %v1483, 7
        %v1490 = vperm.slane %v1485, 7
        %v1491 = vrcp.pop %v1487
        %v1492 = vmul.f32 %v1487, %v1491
        %v1493 = vsub.f32 1.0, %v1492
        %v1494 = vmul.f32 %v1491, %v1493
        %v1495 = vadd.f32 %v1491, %v1494
        %vm1496 = vweird.f32 %v1487
        %vm1497 = vweird.f32 %v1491
        %vm1498 = vmor %vm1496, %vm1497
        %v1499 = vsel %vm1498, %v1491, %v1495
        %v1500 = vand.u32 2147483647, %v1487
        %vm1501 = vcmp.eq.f32.partialorder %v1500, 8.507059e+37
        %v1502 = vand.u32 %v1487, 2147483648
        %v1503 = vor.u32 1.1754944e-38, %v1502
        %v1504 = vsel %vm1501, %v1503, %v1499
        %v1505 = vmul.f32 %v1480, %v1504
        %v1506 = vrcp.pop %v1488
        %v1507 = vmul.f32 %v1488, %v1506
        %v1508 = vsub.f32 1.0, %v1507
        %v1509 = vmul.f32 %v1506, %v1508
        %v1510 = vadd.f32 %v1506, %v1509
        %vm1511 = vweird.f32 %v1488
        %vm1512 = vweird.f32 %v1506
        %vm1513 = vmor %vm1511, %vm1512
        %v1514 = vsel %vm1513, %v1506, %v1510
        %v1515 = vand.u32 2147483647, %v1488
        %vm1516 = vcmp.eq.f32.partialorder %v1515, 8.507059e+37
        %v1517 = vand.u32 %v1488, 2147483648
        %v1518 = vor.u32 1.1754944e-38, %v1517
        %v1519 = vsel %vm1516, %v1518, %v1514
        %v1520 = vmul.f32 %v1482, %v1519
        %v1521 = vrcp.pop %v1489
        %v1522 = vmul.f32 %v1489, %v1521
        %v1523 = vsub.f32 1.0, %v1522
        %v1524 = vmul.f32 %v1521, %v1523
        %v1525 = vadd.f32 %v1521, %v1524
        %vm1526 = vweird.f32 %v1489
        %vm1527 = vweird.f32 %v1521
        %vm1528 = vmor %vm1526, %vm1527
        %v1529 = vsel %vm1528, %v1521, %v1525
        %v1530 = vand.u32 2147483647, %v1489
        %vm1531 = vcmp.eq.f32.partialorder %v1530, 8.507059e+37
        %v1532 = vand.u32 %v1489, 2147483648
        %v1533 = vor.u32 1.1754944e-38, %v1532
        %v1534 = vsel %vm1531, %v1533, %v1529
        %v1535 = vmul.f32 %v1484, %v1534
        %v1536 = vrcp.pop %v1490
        %v1537 = vmul.f32 %v1490, %v1536
        %v1538 = vsub.f32 1.0, %v1537
        %v1539 = vmul.f32 %v1536, %v1538
        %v1540 = vadd.f32 %v1536, %v1539
        %vm1541 = vweird.f32 %v1490
        %vm1542 = vweird.f32 %v1536
        %vm1543 = vmor %vm1541, %vm1542
        %v1544 = vsel %vm1543, %v1536, %v1540
        %v1545 = vand.u32 2147483647, %v1490
        %vm1546 = vcmp.eq.f32.partialorder %v1545, 8.507059e+37
        %v1547 = vand.u32 %v1490, 2147483648
        %v1548 = vor.u32 1.1754944e-38, %v1547
        %v1549 = vsel %vm1546, %v1548, %v1544
        %v1550 = vmul.f32 %v1486, %v1549
        %v1551 = vsub.f32 %v1479, %v441
        %v1552 = vsub.f32 %v1481, %v441
        %v1553 = vsub.f32 %v1483, %v441
        %v1554 = vsub.f32 %v1485, %v441
        %1556 = vset.pattern.permute.xlu0 7
        %1557 = vperm.xlu0 %1556, %v1505
        %v1558 = vpop.permute.xlu0 %1557
        %1561 = vset.pattern.permute.xlu0 7
        %1562 = vperm.xlu0 %1561, %v1520
        %v1563 = vpop.permute.xlu0 %1562
        %1566 = vset.pattern.permute.xlu0 7
        %1567 = vperm.xlu0 %1566, %v1535
        %v1568 = vpop.permute.xlu0 %1567
        %1571 = vset.pattern.permute.xlu0 7
        %1572 = vperm.xlu0 %1571, %v1550
        %v1573 = vpop.permute.xlu0 %1572
        %v1575 = vperm.slane %v1551, 7
        %v1576 = vperm.slane %v1552, 7
        %v1577 = vperm.slane %v1553, 7
        %v1578 = vperm.slane %v1554, 7
        %v1579 = vmul.f32 %v1558, %v1575
        %v1580 = vmul.f32 %v1563, %v1576
        %v1581 = vmul.f32 %v1568, %v1577
        %v1582 = vmul.f32 %v1573, %v1578
        %v1583 = vsub.f32 %v1480, %v1579
        %v1584 = vsub.f32 %v1482, %v1580
        %v1585 = vsub.f32 %v1484, %v1581
        %v1586 = vsub.f32 %v1486, %v1582
        %v1587 = vsel %vm446, %v1583, -inf
        %v1588 = vrot.slane %v1587, 4
        %v1589 = vmax.f32 %v1587, %v1588
        %v1590 = vrot.slane %v1589, 2
        %v1591 = vmax.f32 %v1589, %v1590
        %v1592 = vrot.slane %v1591, 1
        %v1593 = vmax.f32 %v1591, %v1592
        %v1594 = vsel %vm446, %v1584, -inf
        %v1595 = vrot.slane %v1594, 4
        %v1596 = vmax.f32 %v1594, %v1595
        %v1597 = vrot.slane %v1596, 2
        %v1598 = vmax.f32 %v1596, %v1597
        %v1599 = vrot.slane %v1598, 1
        %v1600 = vmax.f32 %v1598, %v1599
        %v1601 = vsel %vm446, %v1585, -inf
        %v1602 = vrot.slane %v1601, 4
        %v1603 = vmax.f32 %v1601, %v1602
        %v1604 = vrot.slane %v1603, 2
        %v1605 = vmax.f32 %v1603, %v1604
        %v1606 = vrot.slane %v1605, 1
        %v1607 = vmax.f32 %v1605, %v1606
        %v1608 = vsel %vm446, %v1586, -inf
        %v1609 = vrot.slane %v1608, 4
        %v1610 = vmax.f32 %v1608, %v1609
        %v1611 = vrot.slane %v1610, 2
        %v1612 = vmax.f32 %v1610, %v1611
        %v1613 = vrot.slane %v1612, 1
        %v1614 = vmax.f32 %v1612, %v1613
        %v1615 = vsub.f32 %v1583, %v1593
        %v1616 = vsub.f32 %v1584, %v1600
        %v1617 = vsub.f32 %v1585, %v1607
        %v1618 = vsub.f32 %v1586, %v1614
        %v1619 = vmul.f32 %v1615, 1.442695
        %v1620 = vpow.pop %v1619
        %v1621 = vmul.f32 %v1616, 1.442695
        %v1622 = vpow.pop %v1621
        %v1623 = vmul.f32 %v1617, 1.442695
        %v1624 = vpow.pop %v1623
        %v1625 = vmul.f32 %v1618, 1.442695
        %v1626 = vpow.pop %v1625
        %v1627 = vsel %vm446, %v1620, 0.0
        %v1628 = vrot.slane %v1627, 4
        %v1629 = vadd.f32 %v1627, %v1628
        %v1630 = vrot.slane %v1629, 2
        %v1631 = vadd.f32 %v1629, %v1630
        %v1632 = vrot.slane %v1631, 1
        %v1633 = vadd.f32 %v1631, %v1632
        %v1634 = vsel %vm446, %v1622, 0.0
        %v1635 = vrot.slane %v1634, 4
        %v1636 = vadd.f32 %v1634, %v1635
        %v1637 = vrot.slane %v1636, 2
        %v1638 = vadd.f32 %v1636, %v1637
        %v1639 = vrot.slane %v1638, 1
        %v1640 = vadd.f32 %v1638, %v1639
        %v1641 = vsel %vm446, %v1624, 0.0
        %v1642 = vrot.slane %v1641, 4
        %v1643 = vadd.f32 %v1641, %v1642
        %v1644 = vrot.slane %v1643, 2
        %v1645 = vadd.f32 %v1643, %v1644
        %v1646 = vrot.slane %v1645, 1
        %v1647 = vadd.f32 %v1645, %v1646
        %v1648 = vsel %vm446, %v1626, 0.0
        %v1649 = vrot.slane %v1648, 4
        %v1650 = vadd.f32 %v1648, %v1649
        %v1651 = vrot.slane %v1650, 2
        %v1652 = vadd.f32 %v1650, %v1651
        %v1653 = vrot.slane %v1652, 1
        %v1654 = vadd.f32 %v1652, %v1653
        %v1655 = vrcp.pop %v1633
        %v1656 = vmul.f32 %v1633, %v1655
        %v1657 = vsub.f32 1.0, %v1656
        %v1658 = vmul.f32 %v1655, %v1657
        %v1659 = vadd.f32 %v1655, %v1658
        %vm1660 = vweird.f32 %v1633
        %vm1661 = vweird.f32 %v1655
        %vm1662 = vmor %vm1660, %vm1661
        %v1663 = vsel %vm1662, %v1655, %v1659
        %v1664 = vand.u32 2147483647, %v1633
        %vm1665 = vcmp.eq.f32.partialorder %v1664, 8.507059e+37
        %v1666 = vand.u32 %v1633, 2147483648
        %v1667 = vor.u32 1.1754944e-38, %v1666
        %v1668 = vsel %vm1665, %v1667, %v1663
        %v1669 = vmul.f32 %v1620, %v1668
        %v1670 = vrcp.pop %v1640
        %v1671 = vmul.f32 %v1640, %v1670
        %v1672 = vsub.f32 1.0, %v1671
        %v1673 = vmul.f32 %v1670, %v1672
        %v1674 = vadd.f32 %v1670, %v1673
        %vm1675 = vweird.f32 %v1640
        %vm1676 = vweird.f32 %v1670
        %vm1677 = vmor %vm1675, %vm1676
        %v1678 = vsel %vm1677, %v1670, %v1674
        %v1679 = vand.u32 2147483647, %v1640
        %vm1680 = vcmp.eq.f32.partialorder %v1679, 8.507059e+37
        %v1681 = vand.u32 %v1640, 2147483648
        %v1682 = vor.u32 1.1754944e-38, %v1681
        %v1683 = vsel %vm1680, %v1682, %v1678
        %v1684 = vmul.f32 %v1622, %v1683
        %v1685 = vrcp.pop %v1647
        %v1686 = vmul.f32 %v1647, %v1685
        %v1687 = vsub.f32 1.0, %v1686
        %v1688 = vmul.f32 %v1685, %v1687
        %v1689 = vadd.f32 %v1685, %v1688
        %vm1690 = vweird.f32 %v1647
        %vm1691 = vweird.f32 %v1685
        %vm1692 = vmor %vm1690, %vm1691
        %v1693 = vsel %vm1692, %v1685, %v1689
        %v1694 = vand.u32 2147483647, %v1647
        %vm1695 = vcmp.eq.f32.partialorder %v1694, 8.507059e+37
        %v1696 = vand.u32 %v1647, 2147483648
        %v1697 = vor.u32 1.1754944e-38, %v1696
        %v1698 = vsel %vm1695, %v1697, %v1693
        %v1699 = vmul.f32 %v1624, %v1698
        %v1700 = vrcp.pop %v1654
        %v1701 = vmul.f32 %v1654, %v1700
        %v1702 = vsub.f32 1.0, %v1701
        %v1703 = vmul.f32 %v1700, %v1702
        %v1704 = vadd.f32 %v1700, %v1703
        %vm1705 = vweird.f32 %v1654
        %vm1706 = vweird.f32 %v1700
        %vm1707 = vmor %vm1705, %vm1706
        %v1708 = vsel %vm1707, %v1700, %v1704
        %v1709 = vand.u32 2147483647, %v1654
        %vm1710 = vcmp.eq.f32.partialorder %v1709, 8.507059e+37
        %v1711 = vand.u32 %v1654, 2147483648
        %v1712 = vor.u32 1.1754944e-38, %v1711
        %v1713 = vsel %vm1710, %v1712, %v1708
        %v1714 = vmul.f32 %v1626, %v1713
        %v1716 = vsel %vm446, %v1669, 0
        %1718 = vmatpush.msra.mxu0 0.0
        %1719 = vmatpush.msra.mxu0 0.0
        %1720 = vmatpush.msra.mxu0 0.0
        %1721 = vmatpush.msra.mxu0 0.0
        %1722 = vmatpush.msra.mxu0 0.0
        %1723 = vmatpush.msra.mxu0 0.0
        %1724 = vmatpush.msra.mxu0 0.0
        %1725 = vmatpush.msra.mxu0 0.0
        %1726 = vmatpush.msra.mxu0 0.0
        %1727 = vmatpush.msra.mxu0 0.0
        %1728 = vmatpush.msra.mxu0 0.0
        %1729 = vmatpush.msra.mxu0 0.0
        %1730 = vmatpush.msra.mxu0 0.0
        %1731 = vmatpush.msra.mxu0 0.0
        %1732 = vmatpush.msra.mxu0 0.0
        %1733 = vmatpush.msra.mxu0 %v415
        %1734 = vmatmul.f32.gmra.mxu0 %v1716
        %v1735 = vpop.f32.mrf.mxu0
        %v1736 = vadd.f32 0.0, %v1735
        %1737 = vdwg.mxu0
        %v1739 = vsel %vm446, %v1684, 0
        %1741 = vmatpush.msra.mxu0 0.0
        %1742 = vmatpush.msra.mxu0 0.0
        %1743 = vmatpush.msra.mxu0 0.0
        %1744 = vmatpush.msra.mxu0 0.0
        %1745 = vmatpush.msra.mxu0 0.0
        %1746 = vmatpush.msra.mxu0 0.0
        %1747 = vmatpush.msra.mxu0 0.0
        %1748 = vmatpush.msra.mxu0 0.0
        %1749 = vmatpush.msra.mxu0 0.0
        %1750 = vmatpush.msra.mxu0 0.0
        %1751 = vmatpush.msra.mxu0 0.0
        %1752 = vmatpush.msra.mxu0 0.0
        %1753 = vmatpush.msra.mxu0 0.0
        %1754 = vmatpush.msra.mxu0 0.0
        %1755 = vmatpush.msra.mxu0 0.0
        %1756 = vmatpush.msra.mxu0 %v418
        %1757 = vmatmul.f32.gmra.mxu0 %v1739
        %v1758 = vpop.f32.mrf.mxu0
        %v1759 = vadd.f32 0.0, %v1758
        %1760 = vdwg.mxu0
        %v1762 = vsel %vm446, %v1699, 0
        %1764 = vmatpush.msra.mxu0 0.0
        %1765 = vmatpush.msra.mxu0 0.0
        %1766 = vmatpush.msra.mxu0 0.0
        %1767 = vmatpush.msra.mxu0 0.0
        %1768 = vmatpush.msra.mxu0 0.0
        %1769 = vmatpush.msra.mxu0 0.0
        %1770 = vmatpush.msra.mxu0 0.0
        %1771 = vmatpush.msra.mxu0 0.0
        %1772 = vmatpush.msra.mxu0 0.0
        %1773 = vmatpush.msra.mxu0 0.0
        %1774 = vmatpush.msra.mxu0 0.0
        %1775 = vmatpush.msra.mxu0 0.0
        %1776 = vmatpush.msra.mxu0 0.0
        %1777 = vmatpush.msra.mxu0 0.0
        %1778 = vmatpush.msra.mxu0 0.0
        %1779 = vmatpush.msra.mxu0 %v421
        %1780 = vmatmul.f32.gmra.mxu0 %v1762
        %v1781 = vpop.f32.mrf.mxu0
        %v1782 = vadd.f32 0.0, %v1781
        %1783 = vdwg.mxu0
        %v1785 = vsel %vm446, %v1714, 0
        %1787 = vmatpush.msra.mxu0 0.0
        %1788 = vmatpush.msra.mxu0 0.0
        %1789 = vmatpush.msra.mxu0 0.0
        %1790 = vmatpush.msra.mxu0 0.0
        %1791 = vmatpush.msra.mxu0 0.0
        %1792 = vmatpush.msra.mxu0 0.0
        %1793 = vmatpush.msra.mxu0 0.0
        %1794 = vmatpush.msra.mxu0 0.0
        %1795 = vmatpush.msra.mxu0 0.0
        %1796 = vmatpush.msra.mxu0 0.0
        %1797 = vmatpush.msra.mxu0 0.0
        %1798 = vmatpush.msra.mxu0 0.0
        %1799 = vmatpush.msra.mxu0 0.0
        %1800 = vmatpush.msra.mxu0 0.0
        %1801 = vmatpush.msra.mxu0 0.0
        %1802 = vmatpush.msra.mxu0 %v424
        %1803 = vmatmul.f32.gmra.mxu0 %v1785
        %v1804 = vpop.f32.mrf.mxu0
        %v1805 = vadd.f32 0.0, %v1804
        %1806 = vdwg.mxu0
        %1807 = vxpose.xlu0.b32.start [1/16] %v1736, 128
        %1808 = vxpose.xlu0.b32.cont [2/16] %v1759, 128
        %1809 = vxpose.xlu0.b32.cont [3/16] %v1782, 128
        %1810 = vxpose.xlu0.b32.cont [4/16] %v1805, 128
        %1811 = vxpose.xlu0.b32.cont [5/16] 0.0, 128
        %1812 = vxpose.xlu0.b32.cont [6/16] 0.0, 128
        %1813 = vxpose.xlu0.b32.cont [7/16] 0.0, 128
        %1814 = vxpose.xlu0.b32.cont [8/16] 0.0, 128
        %1815 = vxpose.xlu0.b32.cont [9/16] 0.0, 128
        %1816 = vxpose.xlu0.b32.cont [10/16] 0.0, 128
        %1817 = vxpose.xlu0.b32.cont [11/16] 0.0, 128
        %1818 = vxpose.xlu0.b32.cont [12/16] 0.0, 128
        %1819 = vxpose.xlu0.b32.cont [13/16] 0.0, 128
        %1820 = vxpose.xlu0.b32.cont [14/16] 0.0, 128
        %1821 = vxpose.xlu0.b32.cont [15/16] 0.0, 128
        %1822 = vxpose.xlu0.b32.end [16/16] 0.0, 128
        %v1823 = vpop.trf.xlu0
        %v1824 = vpop.trf.xlu0
        %v1825 = vpop.trf.xlu0
        %v1826 = vpop.trf.xlu0
        %v1827 = vpop.trf.xlu0
        %v1828 = vpop.trf.xlu0
        %v1829 = vpop.trf.xlu0
        %v1830 = vpop.trf.xlu0
        %v1831 = vpop.trf.xlu0
        %v1832 = vpop.trf.xlu0
        %v1833 = vpop.trf.xlu0
        %v1834 = vpop.trf.xlu0
        %v1835 = vpop.trf.xlu0
        %v1836 = vpop.trf.xlu0
        %v1837 = vpop.trf.xlu0
        %v1838 = vpop.trf.xlu0
        %v1840 = vperm.slane %v431, 0
        %v1843 = vsel %vm333, %v1823, 0
        %v1846 = vsel %vm333, %v427, 0
        %v1849 = vsel %vm333, %v428, 0
        %v1852 = vsel %vm333, %v429, 0
        %v1855 = vsel %vm333, %v430, 0
        %1857 = vmatpush.xpose.msra.mxu0 0.0
        %1858 = vmatpush.xpose.msra.mxu0 0.0
        %1859 = vmatpush.xpose.msra.mxu0 0.0
        %1860 = vmatpush.xpose.msra.mxu0 0.0
        %1861 = vmatpush.xpose.msra.mxu0 0.0
        %1862 = vmatpush.xpose.msra.mxu0 0.0
        %1863 = vmatpush.xpose.msra.mxu0 0.0
        %1864 = vmatpush.xpose.msra.mxu0 0.0
        %1865 = vmatpush.xpose.msra.mxu0 0.0
        %1866 = vmatpush.xpose.msra.mxu0 0.0
        %1867 = vmatpush.xpose.msra.mxu0 0.0
        %1868 = vmatpush.xpose.msra.mxu0 0.0
        %1869 = vmatpush.xpose.msra.mxu0 %v1855
        %1870 = vmatpush.xpose.msra.mxu0 %v1852
        %1871 = vmatpush.xpose.msra.mxu0 %v1849
        %1872 = vmatpush.xpose.msra.mxu0 %v1846
        %1873 = vmatmul.f32.gmra.mxu0 %v1843
        %v1874 = vpop.f32.mrf.mxu0
        %v1875 = vadd.f32 %v1840, %v1874
        %1876 = vdwg.mxu0
        %1877 = vst.msk [vmem:[%s243] sm:$0xff] %vm333, %v1875
        %s1878 = sand.u32 %s160, 1
        %s1879 = scalar_lea.sflag [#allocation4], %s1878
        %s1880 = sand.u32 %s160, 1
        %s1881 = smul.addr %s1880, 8
        %s1882 = scalar_lea.vmem [#allocation3], %s1881
        // Predicated region
        $region45: #{tpu_custom_call.1} parent=43 // pred_check
          %p1883 = pneg %p170
        $region46: #{tpu_custom_call.1} parent=43 // pred_check_branch
          %1885 = sbr.rel (%p1883) target = $region48
        $region47: #{tpu_custom_call.1} parent=43 // pred_region
          %1887 = vsyncadd %s1879, 0
          %s1888 = smul.addr %s21, 8
          %s1889 = scalar_lea.hbm %s6, %s1888
          %s1891 = sshll.u32 %s1882, 4
          %s1892 = int_to_ptr.vmem [resolvable:$true] %s1891
          %s1893 = sshll.u32 %s1889, 4
          %s1894 = int_to_ptr.hbm [resolvable:$true] %s1893
          %1896 = dma.vmem_to_hbm [thread:$0]  %s1892, 128, %s1894, %s1879
        $region48: #{tpu_custom_call.1} parent=43 // pred_fallthru
          _
      $region44: #{tpu_custom_call.1} parent=5 // pred_fallthru
        _
      %p1897 = scmp.le.s32.totalorder 2, %s16
      // Predicated region
      $region49: #{tpu_custom_call.1} parent=5 // pred_check
        %p1898 = pneg %p1897
      $region50: #{tpu_custom_call.1} parent=5 // pred_check_branch
        %1900 = sbr.rel (%p1898) target = $region52
      $region51: #{tpu_custom_call.1} parent=5 // pred_region
        %s1901 = ssub.s32 %s16, 2
        // Predicated region
        $region53: #{tpu_custom_call.1} parent=51 // pred_check
          %p1902 = pneg %p176
        $region54: #{tpu_custom_call.1} parent=51 // pred_check_branch
          %1904 = sbr.rel (%p1902) target = $region56
        $region55: #{tpu_custom_call.1} parent=51 // pred_region
          %s1905 = sand.u32 %s161, 1
          %s1906 = scalar_lea.sflag [#allocation4], %s1905
          %s1907 = sand.u32 %s161, 1
          %s1908 = smul.addr %s1907, 8
          %s1909 = scalar_lea.vmem [#allocation3], %s1908
          %1911 = dma.done %s1906, 128
        $region56: #{tpu_custom_call.1} parent=51 // pred_fallthru
          _
      $region52: #{tpu_custom_call.1} parent=5 // pred_fallthru
        _
    $region6: #{tpu_custom_call.1} parent=1 // loop_footer
      %s20 = sadd.s32 1, %s16
    $region7: #{tpu_custom_call.1} parent=1 // loop_footer_branch
      %15 = sbr.rel target = $region3
    $region8: #{tpu_custom_call.1} parent=1 // loop_exit
      _
    %1912 = vsyncpa [#allocation4], 1
    %s1913 = scalar_lea.sflag [#allocation4], 1
    %1914 = vsyncpa %s1913, 1

</llo_original>
